<compile_context>
chip_gen: v7x
topology: tpu7x:2x2x1
jax: 0.10.0
libtpu: 0.0.40
codegen_flags: <defaults>
</compile_context>

<pallas_src>
import jax
import jax.numpy as jnp
import numpy as np
from jax import lax
from jax.experimental import pallas as pl
from jax.experimental.pallas import tpu as pltpu

H_IN, W_IN = 6, 7
H1, W1 = 3, 4            # after the 4x4 VALID conv
H2, W2 = 2, 3            # after the 2x2 VALID conv
N_PIX = H_IN * W_IN      # 42
N_POS1 = H1 * W1         # 12
N_POS2 = H2 * W2         # 6
C = 64

BM_MAX = 512             # batch tile (bf16 activations keep this well under VMEM limits)


def critic_kernel(x_ref, w1_ref, b1_ref, w2_ref, b2_ref, w4_ref, b4_ref,
                  w5_ref, b5_ref, w6_ref, b6_ref, w7_ref, b7_ref, out_ref):
    f32 = jnp.float32
    mxu = w1_ref.dtype   # bf16 operands for the MXU; accumulate / epilogue in f32

    # Conv2d(1,64,4) + ReLU as one block matmul: (BM,42)@(42,768) -> pos-major lanes.
    x = x_ref[...].astype(mxu)
    h1 = jnp.maximum(
        jnp.dot(x, w1_ref[...], preferred_element_type=f32) + b1_ref[...], 0.0)

    # Conv2d(64,64,2) + (Flatten) + ReLU as one block matmul: (BM,768)@(768,384).
    h2 = jnp.maximum(
        jnp.dot(h1.astype(mxu), w2_ref[...], preferred_element_type=f32)
        + b2_ref[...], 0.0)

    # Linear(384,256) + ReLU (h2 is already in the kernel's pos-major feature order).
    z = jnp.maximum(
        jnp.dot(h2.astype(mxu), w4_ref[...], preferred_element_type=f32)
        + b4_ref[...], 0.0)
    # Linear(256,128) + ReLU
    z = jnp.maximum(
        jnp.dot(z.astype(mxu), w5_ref[...], preferred_element_type=f32)
        + b5_ref[...], 0.0)
    # Linear(128,64) + ReLU
    z = jnp.maximum(
        jnp.dot(z.astype(mxu), w6_ref[...], preferred_element_type=f32)
        + b6_ref[...], 0.0)

    # Linear(64,1) on VPU/XLU: elementwise mul + lane reduce (no 1-lane MXU push).
    out_ref[...] = jnp.sum(z * w7_ref[...], axis=-1, keepdims=True) + b7_ref[...]


def init_params(key):
    """PyTorch-layout params: kaiming_normal_ (fan_in, gain=sqrt(2)) weights,
    zero biases, zero final Linear(64,1) weight and bias — exactly as __init__."""
    f32 = jnp.float32
    k1, k2, k4, k5, k6 = jax.random.split(key, 5)
    w1 = jax.random.normal(k1, (C, 1, 4, 4), f32) * np.sqrt(2.0 / 16.0)      # OIHW
    w2 = jax.random.normal(k2, (C, C, 2, 2), f32) * np.sqrt(2.0 / 256.0)     # OIHW
    w4 = jax.random.normal(k4, (256, 384), f32) * np.sqrt(2.0 / 384.0)       # (out,in)
    w5 = jax.random.normal(k5, (128, 256), f32) * np.sqrt(2.0 / 256.0)
    w6 = jax.random.normal(k6, (64, 128), f32) * np.sqrt(2.0 / 128.0)
    w7 = jnp.zeros((1, 64), f32)
    b1 = jnp.zeros((C,), f32)
    b2 = jnp.zeros((C,), f32)
    b4 = jnp.zeros((256,), f32)
    b5 = jnp.zeros((128,), f32)
    b6 = jnp.zeros((64,), f32)
    b7 = jnp.zeros((1,), f32)
    return (w1, b1, w2, b2, w4, b4, w5, b5, w6, b6, w7, b7)


def pack_params(params, mxu_dtype=jnp.bfloat16):
    """Build the fused kernel layouts (host-side, once):
      w1b: (42, 768)   conv1 block weight, row = pixel i*7+j, col = pos1*64 + c
      w2b: (768, 384)  conv2 block weight, row = pos1*64 + ci, col = pos2*64 + co
      w4k: (384, 256)  fc1 weight permuted so pos2-major lanes match torch Flatten
      w5k/w6k: plain transposes; w7/b7 kept f32 for the VPU head."""
    (w1, b1, w2, b2, w4, b4, w5, b5, w6, b6, w7, b7) = [
        np.asarray(p, np.float32) for p in params]

    w1b = np.zeros((N_PIX, N_POS1 * C), np.float32)
    for i1 in range(H1):
        for j1 in range(W1):
            pos1 = i1 * W1 + j1
            for di in range(4):
                for dj in range(4):
                    pix = (i1 + di) * W_IN + (j1 + dj)
                    w1b[pix, pos1 * C:(pos1 + 1) * C] = w1[:, 0, di, dj]
    b1b = np.tile(b1, N_POS1)[None, :]                                  # (1, 768)

    w2b = np.zeros((N_POS1 * C, N_POS2 * C), np.float32)
    for i2 in range(H2):
        for j2 in range(W2):
            pos2 = i2 * W2 + j2
            for ki in range(2):
                for kj in range(2):
                    pos1 = (i2 + ki) * W1 + (j2 + kj)
                    w2b[pos1 * C:(pos1 + 1) * C,
                        pos2 * C:(pos2 + 1) * C] += w2[:, :, ki, kj].T
    b2b = np.tile(b2, N_POS2)[None, :]                                  # (1, 384)

    # kernel feature lane = pos2*64 + co ; torch Flatten index = co*6 + pos2
    w4k = np.transpose(w4.reshape(256, C, N_POS2), (2, 1, 0)).reshape(N_POS2 * C, 256)
    w5k = w5.T
    w6k = w6.T

    def f(a):
        return jnp.asarray(a, jnp.float32)

    def m(a):
        return jnp.asarray(a, mxu_dtype)

    return (m(w1b), f(b1b), m(w2b), f(b2b),
            m(w4k), f(b4[None, :]), m(w5k), f(b5[None, :]),
            m(w6k), f(b6[None, :]), f(w7), f(b7.reshape(1, 1)))


def _round_up(n, m):
    return ((n + m - 1) // m) * m


@jax.jit
def critic_forward(x, packed):
    weights = packed
    B = x.shape[0]
    x = x.astype(jnp.float32).reshape(B, N_PIX)     # lane-dense (B, 42) raw input

    # Batch tile: biggest that fits comfortably; for mid-size batches make sure
    # there are >= 2 grid steps so v7x's two TensorCores both get work.
    if B <= 16:
        BM = max(8, _round_up(B, 8))
    elif B <= 2 * BM_MAX:
        BM = _round_up(-(-B // 2), 8)
    else:
        BM = BM_MAX
    Bp = _round_up(B, BM)
    if Bp != B:
        x = jnp.pad(x, ((0, Bp - B), (0, 0)))

    def full_spec(arr):
        return pl.BlockSpec(arr.shape, lambda i: (0, 0))   # VMEM-resident weights

    flops = 2 * Bp * (N_PIX * N_POS1 * C + N_POS1 * C * N_POS2 * C
                      + 384 * 256 + 256 * 128 + 128 * 64 + 64)
    bytes_accessed = (4 * (N_PIX * Bp + Bp)
                      + sum(int(np.prod(w.shape)) * w.dtype.itemsize
                            for w in weights))

    out = pl.pallas_call(
        critic_kernel,
        out_shape=jax.ShapeDtypeStruct((Bp, 1), jnp.float32),
        grid=(Bp // BM,),
        in_specs=[pl.BlockSpec((BM, N_PIX), lambda i: (i, 0))]
                 + [full_spec(w) for w in weights],
        out_specs=pl.BlockSpec((BM, 1), lambda i: (i, 0)),
        compiler_params=pltpu.CompilerParams(
            dimension_semantics=("parallel",),
            vmem_limit_bytes=32 * 1024 * 1024),
        cost_estimate=pl.CostEstimate(flops=flops, transcendentals=0,
                                      bytes_accessed=bytes_accessed),
    )(x, *weights)
    return out[:B]


def ref_forward(x, params):
    """Pure-JAX reference using the PyTorch-layout parameters directly."""
    (w1, b1, w2, b2, w4, b4, w5, b5, w6, b6, w7, b7) = params
    x = x.astype(jnp.float32)
    dn = ('NCHW', 'OIHW', 'NCHW')
    y = lax.conv_general_dilated(x, w1, (1, 1), 'VALID', dimension_numbers=dn)
    y = jnp.maximum(y + b1.reshape(1, C, 1, 1), 0.0)
    y = lax.conv_general_dilated(y, w2, (1, 1), 'VALID', dimension_numbers=dn)
    y = y + b2.reshape(1, C, 1, 1)
    y = jnp.maximum(y.reshape(x.shape[0], -1), 0.0)     # Flatten(1) then ReLU
    y = jnp.maximum(y @ w4.T + b4, 0.0)
    y = jnp.maximum(y @ w5.T + b5, 0.0)
    y = jnp.maximum(y @ w6.T + b6, 0.0)
    return y @ w7.T + b7


if __name__ == "__main__":
    key = jax.random.PRNGKey(0)
    kp, kx, kw, kb = jax.random.split(key, 4)
    params = init_params(kp)

    B = 4
    x = jax.random.normal(kx, (B, 1, H_IN, W_IN), jnp.float32)

    # Faithful zero-init head (as in the module): output is exactly zero.
    out = jax.block_until_ready(critic_forward(x, pack_params(params)))
    ref = ref_forward(x, params)
    assert out.shape == (B, 1) and out.dtype == jnp.float32
    np.testing.assert_allclose(np.asarray(out), np.asarray(ref), rtol=3e-2, atol=3e-2)

    # Non-trivial check: non-zero head so the deeper layers reach the output
    # (bf16 MXU operands -> relaxed tolerance).
    p = list(params)
    p[-2] = jax.random.normal(kw, (1, 64), jnp.float32) * 0.1
    p[-1] = jax.random.normal(kb, (1,), jnp.float32)
    params_nz = tuple(p)
    out2 = jax.block_until_ready(critic_forward(x, pack_params(params_nz)))
    ref2 = ref_forward(x, params_nz)
    np.testing.assert_allclose(np.asarray(out2), np.asarray(ref2), rtol=3e-2, atol=3e-2)

    print("KERNEL_OK")
</pallas_src>

<mosaic_0001>
module attributes {stable_mosaic.version = 11 : i64} {
  func.func @critic_kernel(%arg0: i32, %arg1: memref<8x42xf32, #tpu.memory_space<vmem>>, %arg2: memref<42x768xbf16, #tpu.memory_space<vmem>>, %arg3: memref<1x768xf32, #tpu.memory_space<vmem>>, %arg4: memref<768x384xbf16, #tpu.memory_space<vmem>>, %arg5: memref<1x384xf32, #tpu.memory_space<vmem>>, %arg6: memref<384x256xbf16, #tpu.memory_space<vmem>>, %arg7: memref<1x256xf32, #tpu.memory_space<vmem>>, %arg8: memref<256x128xbf16, #tpu.memory_space<vmem>>, %arg9: memref<1x128xf32, #tpu.memory_space<vmem>>, %arg10: memref<128x64xbf16, #tpu.memory_space<vmem>>, %arg11: memref<1x64xf32, #tpu.memory_space<vmem>>, %arg12: memref<1x64xf32, #tpu.memory_space<vmem>>, %arg13: memref<1x1xf32, #tpu.memory_space<vmem>>, %arg14: memref<8x1xf32, #tpu.memory_space<vmem>>) attributes {dimension_semantics = [#tpu.dimension_semantics<parallel>], iteration_bounds = array<i64: 1>, scalar_prefetch = 0 : i64, scratch_operands = 0 : i64, tpu.core_type = #tpu.core_type<tc>, window_params = [{transform_indices = @transform_0, window_bounds = array<i64: 8, 42>}, {pipeline_mode = #tpu.pipeline_mode<synchronous>, transform_indices = @transform_1, window_bounds = array<i64: 42, 768>}, {pipeline_mode = #tpu.pipeline_mode<synchronous>, transform_indices = @transform_2, window_bounds = array<i64: 1, 768>}, {pipeline_mode = #tpu.pipeline_mode<synchronous>, transform_indices = @transform_3, window_bounds = array<i64: 768, 384>}, {pipeline_mode = #tpu.pipeline_mode<synchronous>, transform_indices = @transform_4, window_bounds = array<i64: 1, 384>}, {pipeline_mode = #tpu.pipeline_mode<synchronous>, transform_indices = @transform_5, window_bounds = array<i64: 384, 256>}, {pipeline_mode = #tpu.pipeline_mode<synchronous>, transform_indices = @transform_6, window_bounds = array<i64: 1, 256>}, {pipeline_mode = #tpu.pipeline_mode<synchronous>, transform_indices = @transform_7, window_bounds = array<i64: 256, 128>}, {pipeline_mode = #tpu.pipeline_mode<synchronous>, transform_indices = @transform_8, window_bounds = array<i64: 1, 128>}, {pipeline_mode = #tpu.pipeline_mode<synchronous>, transform_indices = @transform_9, window_bounds = array<i64: 128, 64>}, {pipeline_mode = #tpu.pipeline_mode<synchronous>, transform_indices = @transform_10, window_bounds = array<i64: 1, 64>}, {pipeline_mode = #tpu.pipeline_mode<synchronous>, transform_indices = @transform_11, window_bounds = array<i64: 1, 64>}, {pipeline_mode = #tpu.pipeline_mode<synchronous>, transform_indices = @transform_12, window_bounds = array<i64: 1, 1>}, {transform_indices = @transform_13, window_bounds = array<i64: 8, 1>}]} {
    %c0 = arith.constant 0 : index
    %c0_0 = arith.constant 0 : index
    %0 = vector.load %arg1[%c0, %c0_0] : memref<8x42xf32, #tpu.memory_space<vmem>>, vector<8x42xf32>
    %1 = arith.truncf %0 : vector<8x42xf32> to vector<8x42xbf16>
    %c0_1 = arith.constant 0 : index
    %c0_2 = arith.constant 0 : index
    %2 = vector.load %arg2[%c0_1, %c0_2] : memref<42x768xbf16, #tpu.memory_space<vmem>>, vector<42x768xbf16>
    %cst = arith.constant dense<0.000000e+00> : vector<8x768xf32>
    %3 = tpu.matmul %1, %2, %cst {dimension_numbers = #tpu.dot_dimension_numbers<[1], [0], [0], [1], [0, 0, 1, 1], [], []>} : vector<8x42xbf16>, vector<42x768xbf16>, vector<8x768xf32> -> vector<8x768xf32>
    %c0_3 = arith.constant 0 : index
    %c0_4 = arith.constant 0 : index
    %4 = vector.load %arg3[%c0_3, %c0_4] : memref<1x768xf32, #tpu.memory_space<vmem>>, vector<1x768xf32>
    %5 = vector.broadcast %4 : vector<1x768xf32> to vector<8x768xf32>
    %6 = arith.addf %3, %5 : vector<8x768xf32>
    %cst_5 = arith.constant 0.000000e+00 : f32
    %7 = vector.broadcast %cst_5 : f32 to vector<8x768xf32>
    %8 = arith.maximumf %6, %7 : vector<8x768xf32>
    %9 = arith.truncf %8 : vector<8x768xf32> to vector<8x768xbf16>
    %c0_6 = arith.constant 0 : index
    %c0_7 = arith.constant 0 : index
    %10 = vector.load %arg4[%c0_6, %c0_7] : memref<768x384xbf16, #tpu.memory_space<vmem>>, vector<768x384xbf16>
    %cst_8 = arith.constant dense<0.000000e+00> : vector<8x384xf32>
    %11 = tpu.matmul %9, %10, %cst_8 {dimension_numbers = #tpu.dot_dimension_numbers<[1], [0], [0], [1], [0, 0, 1, 1], [], []>} : vector<8x768xbf16>, vector<768x384xbf16>, vector<8x384xf32> -> vector<8x384xf32>
    %c0_9 = arith.constant 0 : index
    %c0_10 = arith.constant 0 : index
    %12 = vector.load %arg5[%c0_9, %c0_10] : memref<1x384xf32, #tpu.memory_space<vmem>>, vector<1x384xf32>
    %13 = vector.broadcast %12 : vector<1x384xf32> to vector<8x384xf32>
    %14 = arith.addf %11, %13 : vector<8x384xf32>
    %cst_11 = arith.constant 0.000000e+00 : f32
    %15 = vector.broadcast %cst_11 : f32 to vector<8x384xf32>
    %16 = arith.maximumf %14, %15 : vector<8x384xf32>
    %17 = arith.truncf %16 : vector<8x384xf32> to vector<8x384xbf16>
    %c0_12 = arith.constant 0 : index
    %c0_13 = arith.constant 0 : index
    %18 = vector.load %arg6[%c0_12, %c0_13] : memref<384x256xbf16, #tpu.memory_space<vmem>>, vector<384x256xbf16>
    %cst_14 = arith.constant dense<0.000000e+00> : vector<8x256xf32>
    %19 = tpu.matmul %17, %18, %cst_14 {dimension_numbers = #tpu.dot_dimension_numbers<[1], [0], [0], [1], [0, 0, 1, 1], [], []>} : vector<8x384xbf16>, vector<384x256xbf16>, vector<8x256xf32> -> vector<8x256xf32>
    %c0_15 = arith.constant 0 : index
    %c0_16 = arith.constant 0 : index
    %20 = vector.load %arg7[%c0_15, %c0_16] : memref<1x256xf32, #tpu.memory_space<vmem>>, vector<1x256xf32>
    %21 = vector.broadcast %20 : vector<1x256xf32> to vector<8x256xf32>
    %22 = arith.addf %19, %21 : vector<8x256xf32>
    %cst_17 = arith.constant 0.000000e+00 : f32
    %23 = vector.broadcast %cst_17 : f32 to vector<8x256xf32>
    %24 = arith.maximumf %22, %23 : vector<8x256xf32>
    %25 = arith.truncf %24 : vector<8x256xf32> to vector<8x256xbf16>
    %c0_18 = arith.constant 0 : index
    %c0_19 = arith.constant 0 : index
    %26 = vector.load %arg8[%c0_18, %c0_19] : memref<256x128xbf16, #tpu.memory_space<vmem>>, vector<256x128xbf16>
    %cst_20 = arith.constant dense<0.000000e+00> : vector<8x128xf32>
    %27 = tpu.matmul %25, %26, %cst_20 {dimension_numbers = #tpu.dot_dimension_numbers<[1], [0], [0], [1], [0, 0, 1, 1], [], []>} : vector<8x256xbf16>, vector<256x128xbf16>, vector<8x128xf32> -> vector<8x128xf32>
    %c0_21 = arith.constant 0 : index
    %c0_22 = arith.constant 0 : index
    %28 = vector.load %arg9[%c0_21, %c0_22] : memref<1x128xf32, #tpu.memory_space<vmem>>, vector<1x128xf32>
    %29 = vector.broadcast %28 : vector<1x128xf32> to vector<8x128xf32>
    %30 = arith.addf %27, %29 : vector<8x128xf32>
    %cst_23 = arith.constant 0.000000e+00 : f32
    %31 = vector.broadcast %cst_23 : f32 to vector<8x128xf32>
    %32 = arith.maximumf %30, %31 : vector<8x128xf32>
    %33 = arith.truncf %32 : vector<8x128xf32> to vector<8x128xbf16>
    %c0_24 = arith.constant 0 : index
    %c0_25 = arith.constant 0 : index
    %34 = vector.load %arg10[%c0_24, %c0_25] : memref<128x64xbf16, #tpu.memory_space<vmem>>, vector<128x64xbf16>
    %cst_26 = arith.constant dense<0.000000e+00> : vector<8x64xf32>
    %35 = tpu.matmul %33, %34, %cst_26 {dimension_numbers = #tpu.dot_dimension_numbers<[1], [0], [0], [1], [0, 0, 1, 1], [], []>} : vector<8x128xbf16>, vector<128x64xbf16>, vector<8x64xf32> -> vector<8x64xf32>
    %c0_27 = arith.constant 0 : index
    %c0_28 = arith.constant 0 : index
    %36 = vector.load %arg11[%c0_27, %c0_28] : memref<1x64xf32, #tpu.memory_space<vmem>>, vector<1x64xf32>
    %37 = vector.broadcast %36 : vector<1x64xf32> to vector<8x64xf32>
    %38 = arith.addf %35, %37 : vector<8x64xf32>
    %cst_29 = arith.constant 0.000000e+00 : f32
    %39 = vector.broadcast %cst_29 : f32 to vector<8x64xf32>
    %40 = arith.maximumf %38, %39 : vector<8x64xf32>
    %c0_30 = arith.constant 0 : index
    %c0_31 = arith.constant 0 : index
    %41 = vector.load %arg12[%c0_30, %c0_31] : memref<1x64xf32, #tpu.memory_space<vmem>>, vector<1x64xf32>
    %42 = vector.broadcast %41 : vector<1x64xf32> to vector<8x64xf32>
    %43 = arith.mulf %40, %42 : vector<8x64xf32>
    %cst_32 = arith.constant dense<0.000000e+00> : vector<8xf32>
    %44 = vector.multi_reduction <add>, %43, %cst_32 [1] : vector<8x64xf32> to vector<8xf32>
    %45 = vector.shape_cast %44 : vector<8xf32> to vector<8x1xf32>
    %c0_33 = arith.constant 0 : index
    %c0_34 = arith.constant 0 : index
    %46 = vector.load %arg13[%c0_33, %c0_34] : memref<1x1xf32, #tpu.memory_space<vmem>>, vector<1x1xf32>
    %47 = vector.broadcast %46 : vector<1x1xf32> to vector<8x1xf32>
    %48 = arith.addf %45, %47 : vector<8x1xf32>
    %c0_35 = arith.constant 0 : index
    %c0_36 = arith.constant 0 : index
    %49 = vector.load %arg14[%c0_35, %c0_36] : memref<8x1xf32, #tpu.memory_space<vmem>>, vector<8x1xf32>
    tpu.vector_store %arg14[%c0_35, %c0_36], %48 {strides = array<i32>} : memref<8x1xf32, #tpu.memory_space<vmem>>, vector<8x1xf32>,
    return
  }
  func.func @transform_0(%arg0: i32) -> (i32, i32) {
    %c0_i32 = arith.constant 0 : i32
    %c0_i32_0 = arith.constant 0 : i32
    return %arg0, %c0_i32 : i32, i32
  }
  func.func @transform_1(%arg0: i32) -> (i32, i32) {
    %c0_i32 = arith.constant 0 : i32
    %c0_i32_0 = arith.constant 0 : i32
    %c0_i32_1 = arith.constant 0 : i32
    return %c0_i32, %c0_i32_0 : i32, i32
  }
  func.func @transform_2(%arg0: i32) -> (i32, i32) {
    %c0_i32 = arith.constant 0 : i32
    %c0_i32_0 = arith.constant 0 : i32
    %c0_i32_1 = arith.constant 0 : i32
    return %c0_i32, %c0_i32_0 : i32, i32
  }
  func.func @transform_3(%arg0: i32) -> (i32, i32) {
    %c0_i32 = arith.constant 0 : i32
    %c0_i32_0 = arith.constant 0 : i32
    %c0_i32_1 = arith.constant 0 : i32
    return %c0_i32, %c0_i32_0 : i32, i32
  }
  func.func @transform_4(%arg0: i32) -> (i32, i32) {
    %c0_i32 = arith.constant 0 : i32
    %c0_i32_0 = arith.constant 0 : i32
    %c0_i32_1 = arith.constant 0 : i32
    return %c0_i32, %c0_i32_0 : i32, i32
  }
  func.func @transform_5(%arg0: i32) -> (i32, i32) {
    %c0_i32 = arith.constant 0 : i32
    %c0_i32_0 = arith.constant 0 : i32
    %c0_i32_1 = arith.constant 0 : i32
    return %c0_i32, %c0_i32_0 : i32, i32
  }
  func.func @transform_6(%arg0: i32) -> (i32, i32) {
    %c0_i32 = arith.constant 0 : i32
    %c0_i32_0 = arith.constant 0 : i32
    %c0_i32_1 = arith.constant 0 : i32
    return %c0_i32, %c0_i32_0 : i32, i32
  }
  func.func @transform_7(%arg0: i32) -> (i32, i32) {
    %c0_i32 = arith.constant 0 : i32
    %c0_i32_0 = arith.constant 0 : i32
    %c0_i32_1 = arith.constant 0 : i32
    return %c0_i32, %c0_i32_0 : i32, i32
  }
  func.func @transform_8(%arg0: i32) -> (i32, i32) {
    %c0_i32 = arith.constant 0 : i32
    %c0_i32_0 = arith.constant 0 : i32
    %c0_i32_1 = arith.constant 0 : i32
    return %c0_i32, %c0_i32_0 : i32, i32
  }
  func.func @transform_9(%arg0: i32) -> (i32, i32) {
    %c0_i32 = arith.constant 0 : i32
    %c0_i32_0 = arith.constant 0 : i32
    %c0_i32_1 = arith.constant 0 : i32
    return %c0_i32, %c0_i32_0 : i32, i32
  }
  func.func @transform_10(%arg0: i32) -> (i32, i32) {
    %c0_i32 = arith.constant 0 : i32
    %c0_i32_0 = arith.constant 0 : i32
    %c0_i32_1 = arith.constant 0 : i32
    return %c0_i32, %c0_i32_0 : i32, i32
  }
  func.func @transform_11(%arg0: i32) -> (i32, i32) {
    %c0_i32 = arith.constant 0 : i32
    %c0_i32_0 = arith.constant 0 : i32
    %c0_i32_1 = arith.constant 0 : i32
    return %c0_i32, %c0_i32_0 : i32, i32
  }
  func.func @transform_12(%arg0: i32) -> (i32, i32) {
    %c0_i32 = arith.constant 0 : i32
    %c0_i32_0 = arith.constant 0 : i32
    %c0_i32_1 = arith.constant 0 : i32
    return %c0_i32, %c0_i32_0 : i32, i32
  }
  func.func @transform_13(%arg0: i32) -> (i32, i32) {
    %c0_i32 = arith.constant 0 : i32
    %c0_i32_0 = arith.constant 0 : i32
    return %arg0, %c0_i32 : i32, i32
  }
}

</mosaic_0001>

<llo_original>
// kernel: critic_forward.1
$region0: #{critic_forward.1}
  #allocation0 [shape = 'u32[]', space=smem, size = 0x4, offset = 0x4, fixed_abs, tag = 'smem constant byte address 0x4 - core index']
  #allocation1 [shape = 'u32[144,128]{1,0:T(1,128)}', space=vmem, size = 0x12000, scoped, tag = 'internal scratch']
  #allocation2 [shape = 'f32[1,1]{1,0:T(1,128)S(1)}', space=vmem, size = 0x200, scoped, tag = 'scoped memory for critic_forward.1']
  %s0 = inlined_call_operand.vmem [shape: f32[8,42], index: 0, kind: input, shape index: {}]
  %s1 = inlined_call_operand.vmem [shape: bf16[42,768], index: 1, kind: input, shape index: {}]
  %s2 = inlined_call_operand.vmem [shape: f32[1,768], index: 2, kind: input, shape index: {}]
  %s3 = inlined_call_operand.hbm [shape: bf16[768,384], index: 3, kind: input, shape index: {}]
  %s4 = inlined_call_operand.vmem [shape: f32[1,384], index: 4, kind: input, shape index: {}]
  %s5 = inlined_call_operand.hbm [shape: bf16[384,256], index: 5, kind: input, shape index: {}]
  %s6 = inlined_call_operand.vmem [shape: f32[1,256], index: 6, kind: input, shape index: {}]
  %s7 = inlined_call_operand.hbm [shape: bf16[256,128], index: 7, kind: input, shape index: {}]
  %s8 = inlined_call_operand.vmem [shape: f32[1,128], index: 8, kind: input, shape index: {}]
  %s9 = inlined_call_operand.vmem [shape: bf16[128,64], index: 9, kind: input, shape index: {}]
  %s10 = inlined_call_operand.vmem [shape: f32[1,64], index: 10, kind: input, shape index: {}]
  %s11 = inlined_call_operand.vmem [shape: f32[1,64], index: 11, kind: input, shape index: {}]
  %s12 = inlined_call_operand.<no memory space> [shape: f32[1,1], index: 12, kind: input, shape index: {}]
  %s13 = inlined_call_operand.vmem [shape: f32[8,1], index: 13, kind: output, shape index: {}]
  %s14 = sld [smem:[#allocation0]]
  $region74: #{critic_forward.1} parent=0
    _
  %s16 = ssub.s32 1, %s14
  %s17 = scalar_select 0, %s16, %s14
  %v18 = vstv %s12
  %19 = vst [vmem:[#allocation2] sm:$0x1] %v18
  $region1: #{critic_forward.1} parent=0
    #allocation3 [shape = 'u8[589824]{0}', space=vmem, size = 0x90000, scoped, tag = 'input window, operand 3, single buffered']
    #allocation4 [shape = 's32[1]{0}', space=sflag, size = 0x4, scoped, tag = 'scoped memory for critic_forward.1']
    #allocation5 [shape = 'u8[196608]{0}', space=vmem, size = 0x30000, scoped, tag = 'input window, operand 5, single buffered']
    #allocation6 [shape = 's32[1]{0}', space=sflag, size = 0x4, scoped, tag = 'scoped memory for critic_forward.1']
    #allocation7 [shape = 'u8[65536]{0}', space=vmem, size = 0x10000, scoped, tag = 'input window, operand 7, single buffered']
    %20 = vsyncpa [#allocation4], 0
    %21 = vsyncpa [#allocation6], 0
    // Predicated region
    $region2: #{critic_forward.1} parent=1 // pred_check
      _
    $region3: #{critic_forward.1} parent=1 // pred_check_branch
      %23 = sbr.rel (0) target = $region5
    $region4: #{critic_forward.1} parent=1 // pred_region
      _
    $region5: #{critic_forward.1} parent=1 // pred_fallthru
      _
    // Predicated region
    $region6: #{critic_forward.1} parent=1 // pred_check
      _
    $region7: #{critic_forward.1} parent=1 // pred_check_branch
      %25 = sbr.rel (0) target = $region9
    $region8: #{critic_forward.1} parent=1 // pred_region
      _
    $region9: #{critic_forward.1} parent=1 // pred_fallthru
      _
    // Predicated region
    $region10: #{critic_forward.1} parent=1 // pred_check
      _
    $region11: #{critic_forward.1} parent=1 // pred_check_branch
      %27 = sbr.rel (0) target = $region13
    $region12: #{critic_forward.1} parent=1 // pred_region
      _
    $region13: #{critic_forward.1} parent=1 // pred_fallthru
      _
    // Predicated region
    $region14: #{critic_forward.1} parent=1 // pred_check
      _
    $region15: #{critic_forward.1} parent=1 // pred_check_branch
      %29 = sbr.rel (0) target = $region17
    $region16: #{critic_forward.1} parent=1 // pred_region
      %s31 = ssub.s32 18432, 18432
      %32 = vsyncadd [#allocation4], %s31
      %s33 = sshll.u32 [#allocation3], 4
      %s34 = int_to_ptr.vmem [resolvable:$true] %s33
      %39 = dma.hbm_to_vmem [thread:$0]  %s3, 18432, %s34, [#allocation4], 192, 192, 12
    $region17: #{critic_forward.1} parent=1 // pred_fallthru
      _
    // Predicated region
    $region18: #{critic_forward.1} parent=1 // pred_check
      _
    $region19: #{critic_forward.1} parent=1 // pred_check_branch
      %41 = sbr.rel (0) target = $region21
    $region20: #{critic_forward.1} parent=1 // pred_region
      _
    $region21: #{critic_forward.1} parent=1 // pred_fallthru
      _
    // Predicated region
    $region22: #{critic_forward.1} parent=1 // pred_check
      _
    $region23: #{critic_forward.1} parent=1 // pred_check_branch
      %43 = sbr.rel (0) target = $region25
    $region24: #{critic_forward.1} parent=1 // pred_region
      %s45 = ssub.s32 6144, 6144
      %46 = vsyncadd [#allocation6], %s45
      %s47 = sshll.u32 [#allocation5], 4
      %s48 = int_to_ptr.vmem [resolvable:$true] %s47
      %53 = dma.hbm_to_vmem [thread:$0]  %s5, 6144, %s48, [#allocation6], 128, 128, 8
    $region25: #{critic_forward.1} parent=1 // pred_fallthru
      _
    // Predicated region
    $region26: #{critic_forward.1} parent=1 // pred_check
      _
    $region27: #{critic_forward.1} parent=1 // pred_check_branch
      %55 = sbr.rel (0) target = $region29
    $region28: #{critic_forward.1} parent=1 // pred_region
      _
    $region29: #{critic_forward.1} parent=1 // pred_fallthru
      _
    // Predicated region
    $region30: #{critic_forward.1} parent=1 // pred_check
      _
    $region31: #{critic_forward.1} parent=1 // pred_check_branch
      %57 = sbr.rel (0) target = $region33
    $region32: #{critic_forward.1} parent=1 // pred_region
      %s59 = ssub.s32 2048, 2048
      %60 = vsyncadd [#allocation6], %s59
      %s61 = sshll.u32 [#allocation7], 4
      %s62 = int_to_ptr.vmem [resolvable:$true] %s61
      %67 = dma.hbm_to_vmem [thread:$0]  %s7, 2048, %s62, [#allocation6], 64, 64, 4
    $region33: #{critic_forward.1} parent=1 // pred_fallthru
      _
    // Predicated region
    $region34: #{critic_forward.1} parent=1 // pred_check
      _
    $region35: #{critic_forward.1} parent=1 // pred_check_branch
      %69 = sbr.rel (0) target = $region37
    $region36: #{critic_forward.1} parent=1 // pred_region
      _
    $region37: #{critic_forward.1} parent=1 // pred_fallthru
      _
    // Predicated region
    $region38: #{critic_forward.1} parent=1 // pred_check
      _
    $region39: #{critic_forward.1} parent=1 // pred_check_branch
      %71 = sbr.rel (0) target = $region41
    $region40: #{critic_forward.1} parent=1 // pred_region
      _
    $region41: #{critic_forward.1} parent=1 // pred_fallthru
      _
    // Predicated region
    $region42: #{critic_forward.1} parent=1 // pred_check
      _
    $region43: #{critic_forward.1} parent=1 // pred_check_branch
      %73 = sbr.rel (0) target = $region45
    $region44: #{critic_forward.1} parent=1 // pred_region
      _
    $region45: #{critic_forward.1} parent=1 // pred_fallthru
      _
    // Predicated region
    $region46: #{critic_forward.1} parent=1 // pred_check
      _
    $region47: #{critic_forward.1} parent=1 // pred_check_branch
      %75 = sbr.rel (0) target = $region49
    $region48: #{critic_forward.1} parent=1 // pred_region
      _
    $region49: #{critic_forward.1} parent=1 // pred_fallthru
      _
    // Predicated region
    $region50: #{critic_forward.1} parent=1 // pred_check
      _
    $region51: #{critic_forward.1} parent=1 // pred_check_branch
      %77 = sbr.rel (0) target = $region53
    $region52: #{critic_forward.1} parent=1 // pred_region
      _
    $region53: #{critic_forward.1} parent=1 // pred_fallthru
      _
    // Predicated region
    $region54: #{critic_forward.1} parent=1 // pred_check
      _
    $region55: #{critic_forward.1} parent=1 // pred_check_branch
      %79 = sbr.rel (0) target = $region57
    $region56: #{critic_forward.1} parent=1 // pred_region
      %80 = dma.done [#allocation4], 18432
    $region57: #{critic_forward.1} parent=1 // pred_fallthru
      _
    // Predicated region
    $region58: #{critic_forward.1} parent=1 // pred_check
      _
    $region59: #{critic_forward.1} parent=1 // pred_check_branch
      %82 = sbr.rel (0) target = $region61
    $region60: #{critic_forward.1} parent=1 // pred_region
      %83 = dma.done [#allocation6], 6144
    $region61: #{critic_forward.1} parent=1 // pred_fallthru
      _
    // Predicated region
    $region62: #{critic_forward.1} parent=1 // pred_check
      _
    $region63: #{critic_forward.1} parent=1 // pred_check_branch
      %85 = sbr.rel (0) target = $region65
    $region64: #{critic_forward.1} parent=1 // pred_region
      %86 = dma.done [#allocation6], 2048
    $region65: #{critic_forward.1} parent=1 // pred_fallthru
      _
    %v88 = vld [vmem:[%s0] sm:$0xff]
    %v89 = vpack.c.bf16 %v88, %v88
    %v90 = vld [vmem:[%s1] sm:$0xff]
    %v91 = vld [vmem:[%s1 + $0x8] sm:$0xff]
    %v92 = vld [vmem:[%s1 + $0x10] sm:$0xff]
    %v93 = vld [vmem:[%s1 + $0x18] sm:$0xff]
    %v94 = vld [vmem:[%s1 + $0x20] sm:$0xff]
    %v95 = vld [vmem:[%s1 + $0x28] sm:$0xff]
    %v96 = vld [vmem:[%s1 + $0x30] sm:$0xff]
    %v97 = vld [vmem:[%s1 + $0x38] sm:$0xff]
    %v98 = vld [vmem:[%s1 + $0x40] sm:$0xff]
    %v99 = vld [vmem:[%s1 + $0x48] sm:$0xff]
    %v100 = vld [vmem:[%s1 + $0x50] sm:$0xff]
    %v101 = vld [vmem:[%s1 + $0x58] sm:$0xff]
    %v102 = vld [vmem:[%s1 + $0x60] sm:$0xff]
    %v103 = vld [vmem:[%s1 + $0x68] sm:$0xff]
    %v104 = vld [vmem:[%s1 + $0x70] sm:$0xff]
    %v105 = vld [vmem:[%s1 + $0x78] sm:$0x11]
    %v106 = vld [vmem:[%s1 + $0x80] sm:$0x11]
    %v107 = vld [vmem:[%s1 + $0x88] sm:$0x11]
    %v108 = vld [vmem:[%s2] sm:$0x3f]
    %v110 = vlaneseq
    %v111 = vshrl.u32 %v110, 7
    %v112 = vsub.s32 0, %v111
    %v113 = vrot.slane %v108, %v112
    %v114 = vlaneseq
    %v115 = vshrl.u32 %v114, 7
    %v116 = vsub.s32 1, %v115
    %v117 = vrot.slane %v108, %v116
    %v118 = vlaneseq
    %v119 = vshrl.u32 %v118, 7
    %v120 = vsub.s32 2, %v119
    %v121 = vrot.slane %v108, %v120
    %v122 = vlaneseq
    %v123 = vshrl.u32 %v122, 7
    %v124 = vsub.s32 3, %v123
    %v125 = vrot.slane %v108, %v124
    %v126 = vlaneseq
    %v127 = vshrl.u32 %v126, 7
    %v128 = vsub.s32 4, %v127
    %v129 = vrot.slane %v108, %v128
    %v130 = vlaneseq
    %v131 = vshrl.u32 %v130, 7
    %v132 = vsub.s32 5, %v131
    %v133 = vrot.slane %v108, %v132
    %v158 = vunpack.c.l.b16 %v90
    %v159 = vunpack.c.h.b16 %v90
    %v160 = vunpack.c.l.b16 %v91
    %v161 = vunpack.c.h.b16 %v91
    %v162 = vunpack.c.l.b16 %v92
    %v163 = vunpack.c.h.b16 %v92
    %v164 = vunpack.c.l.b16 %v93
    %v165 = vunpack.c.h.b16 %v93
    %v166 = vunpack.c.l.b16 %v94
    %v167 = vunpack.c.h.b16 %v94
    %v168 = vunpack.c.l.b16 %v95
    %v169 = vunpack.c.h.b16 %v95
    %v170 = vunpack.c.l.b16 %v96
    %v171 = vunpack.c.h.b16 %v96
    %v172 = vunpack.c.l.b16 %v97
    %v173 = vunpack.c.h.b16 %v97
    %v174 = vunpack.c.l.b16 %v98
    %v175 = vunpack.c.h.b16 %v98
    %v176 = vunpack.c.l.b16 %v99
    %v177 = vunpack.c.h.b16 %v99
    %v178 = vunpack.c.l.b16 %v100
    %v179 = vunpack.c.h.b16 %v100
    %v180 = vunpack.c.l.b16 %v101
    %v181 = vunpack.c.h.b16 %v101
    %v182 = vunpack.c.l.b16 %v102
    %v183 = vunpack.c.h.b16 %v102
    %v184 = vunpack.c.l.b16 %v103
    %v185 = vunpack.c.h.b16 %v103
    %v186 = vunpack.c.l.b16 %v104
    %v187 = vunpack.c.h.b16 %v104
    %v188 = vunpack.c.l.b16 %v105
    %v189 = vunpack.c.h.b16 %v105
    %v190 = vunpack.c.l.b16 %v106
    %v191 = vunpack.c.h.b16 %v106
    %v192 = vunpack.c.l.b16 %v107
    %v193 = vunpack.c.h.b16 %v107
    %v194 = vpack.c.b16 %v164, %v158
    %v195 = vpack.c.b16 %v165, %v159
    %v196 = vpack.c.b16 %v166, %v160
    %v197 = vpack.c.b16 %v167, %v161
    %v198 = vpack.c.b16 %v168, %v162
    %v199 = vpack.c.b16 %v169, %v163
    %v200 = vpack.c.b16 %v176, %v170
    %v201 = vpack.c.b16 %v177, %v171
    %v202 = vpack.c.b16 %v178, %v172
    %v203 = vpack.c.b16 %v179, %v173
    %v204 = vpack.c.b16 %v180, %v174
    %v205 = vpack.c.b16 %v181, %v175
    %v206 = vpack.c.b16 %v188, %v182
    %v207 = vpack.c.b16 %v189, %v183
    %v208 = vpack.c.b16 %v190, %v184
    %v209 = vpack.c.b16 %v191, %v185
    %v210 = vpack.c.b16 %v192, %v186
    %v211 = vpack.c.b16 %v193, %v187
    %vm224 = vcmask 343040
    %v226 = vsel %vm224, %v89, 0
    %vm228 = vcmask 1044480
    %v230 = vsel %vm228, %v206, 0
    %v233 = vsel %vm228, %v207, 0
    %v236 = vsel %vm228, %v208, 0
    %v239 = vsel %vm228, %v209, 0
    %v242 = vsel %vm228, %v210, 0
    %v245 = vsel %vm228, %v211, 0
    %247 = vmatprep.subr.bf16.mxu0 %v195
    %248 = vmatpush1.bf16.msra.mxu0 %v194
    %249 = vmatprep.subr.bf16.mxu0 %v201
    %250 = vmatpush1.bf16.msra.mxu0 %v200
    %251 = vmatprep.subr.bf16.mxu0 %v233
    %252 = vmatpush1.bf16.msra.mxu0 %v230
    %253 = vmatprep.subr.bf16.mxu0 0
    %254 = vmatpush1.bf16.msra.mxu0 0
    %255 = vmatprep.subr.bf16.mxu0 0
    %256 = vmatpush1.bf16.msra.mxu0 0
    %257 = vmatprep.subr.bf16.mxu0 0
    %258 = vmatpush1.bf16.msra.mxu0 0
    %259 = vmatprep.subr.bf16.mxu0 0
    %260 = vmatpush1.bf16.msra.mxu0 0
    %261 = vmatprep.subr.bf16.mxu0 0
    %262 = vmatpush1.bf16.msra.mxu0 0
    %263 = vmatprep.subr.bf16.mxu0 0
    %264 = vmatpush1.bf16.msra.mxu0 0
    %265 = vmatprep.subr.bf16.mxu0 0
    %266 = vmatpush1.bf16.msra.mxu0 0
    %267 = vmatprep.subr.bf16.mxu0 0
    %268 = vmatpush1.bf16.msra.mxu0 0
    %269 = vmatprep.subr.bf16.mxu0 0
    %270 = vmatpush1.bf16.msra.mxu0 0
    %271 = vmatprep.subr.bf16.mxu0 0
    %272 = vmatpush1.bf16.msra.mxu0 0
    %273 = vmatprep.subr.bf16.mxu0 0
    %274 = vmatpush1.bf16.msra.mxu0 0
    %275 = vmatprep.subr.bf16.mxu0 0
    %276 = vmatpush1.bf16.msra.mxu0 0
    %277 = vmatprep.subr.bf16.mxu0 0
    %278 = vmatpush1.bf16.msra.mxu0 0
    %279 = vmatprep.mubr.bf16.mxu0 0
    %280 = vmatmul.mubr.bf16.gmra.mrb[0].mxu0 %v226
    %v281 = vpop.f32.mrb[0].mxu0
    %v282 = vadd.f32 %v113, %v281
    %v283 = vpop.f32.mrb[0].mxu0
    %v284 = vadd.f32 %v117, %v283
    %v285 = vpop.f32.mrb[0].mxu0
    %v286 = vpop.f32.mrb[0].mxu0
    %287 = vdwg.mxu0
    %288 = vmatprep.subr.bf16.mxu0 %v197
    %289 = vmatpush1.bf16.msra.mxu0 %v196
    %290 = vmatprep.subr.bf16.mxu0 %v203
    %291 = vmatpush1.bf16.msra.mxu0 %v202
    %292 = vmatprep.subr.bf16.mxu0 %v239
    %293 = vmatpush1.bf16.msra.mxu0 %v236
    %294 = vmatprep.subr.bf16.mxu0 0
    %295 = vmatpush1.bf16.msra.mxu0 0
    %296 = vmatprep.subr.bf16.mxu0 0
    %297 = vmatpush1.bf16.msra.mxu0 0
    %298 = vmatprep.subr.bf16.mxu0 0
    %299 = vmatpush1.bf16.msra.mxu0 0
    %300 = vmatprep.subr.bf16.mxu0 0
    %301 = vmatpush1.bf16.msra.mxu0 0
    %302 = vmatprep.subr.bf16.mxu0 0
    %303 = vmatpush1.bf16.msra.mxu0 0
    %304 = vmatprep.subr.bf16.mxu0 0
    %305 = vmatpush1.bf16.msra.mxu0 0
    %306 = vmatprep.subr.bf16.mxu0 0
    %307 = vmatpush1.bf16.msra.mxu0 0
    %308 = vmatprep.subr.bf16.mxu0 0
    %309 = vmatpush1.bf16.msra.mxu0 0
    %310 = vmatprep.subr.bf16.mxu0 0
    %311 = vmatpush1.bf16.msra.mxu0 0
    %312 = vmatprep.subr.bf16.mxu0 0
    %313 = vmatpush1.bf16.msra.mxu0 0
    %314 = vmatprep.subr.bf16.mxu0 0
    %315 = vmatpush1.bf16.msra.mxu0 0
    %316 = vmatprep.subr.bf16.mxu0 0
    %317 = vmatpush1.bf16.msra.mxu0 0
    %318 = vmatprep.subr.bf16.mxu0 0
    %319 = vmatpush1.bf16.msra.mxu0 0
    %320 = vmatprep.mubr.bf16.mxu0 0
    %321 = vmatmul.mubr.bf16.gmra.mrb[0].mxu0 %v226
    %v322 = vpop.f32.mrb[0].mxu0
    %v323 = vadd.f32 %v121, %v322
    %v324 = vpop.f32.mrb[0].mxu0
    %v325 = vadd.f32 %v125, %v324
    %v326 = vpop.f32.mrb[0].mxu0
    %v327 = vpop.f32.mrb[0].mxu0
    %328 = vdwg.mxu0
    %329 = vmatprep.subr.bf16.mxu0 %v199
    %330 = vmatpush1.bf16.msra.mxu0 %v198
    %331 = vmatprep.subr.bf16.mxu0 %v205
    %332 = vmatpush1.bf16.msra.mxu0 %v204
    %333 = vmatprep.subr.bf16.mxu0 %v245
    %334 = vmatpush1.bf16.msra.mxu0 %v242
    %335 = vmatprep.subr.bf16.mxu0 0
    %336 = vmatpush1.bf16.msra.mxu0 0
    %337 = vmatprep.subr.bf16.mxu0 0
    %338 = vmatpush1.bf16.msra.mxu0 0
    %339 = vmatprep.subr.bf16.mxu0 0
    %340 = vmatpush1.bf16.msra.mxu0 0
    %341 = vmatprep.subr.bf16.mxu0 0
    %342 = vmatpush1.bf16.msra.mxu0 0
    %343 = vmatprep.subr.bf16.mxu0 0
    %344 = vmatpush1.bf16.msra.mxu0 0
    %345 = vmatprep.subr.bf16.mxu0 0
    %346 = vmatpush1.bf16.msra.mxu0 0
    %347 = vmatprep.subr.bf16.mxu0 0
    %348 = vmatpush1.bf16.msra.mxu0 0
    %349 = vmatprep.subr.bf16.mxu0 0
    %350 = vmatpush1.bf16.msra.mxu0 0
    %351 = vmatprep.subr.bf16.mxu0 0
    %352 = vmatpush1.bf16.msra.mxu0 0
    %353 = vmatprep.subr.bf16.mxu0 0
    %354 = vmatpush1.bf16.msra.mxu0 0
    %355 = vmatprep.subr.bf16.mxu0 0
    %356 = vmatpush1.bf16.msra.mxu0 0
    %357 = vmatprep.subr.bf16.mxu0 0
    %358 = vmatpush1.bf16.msra.mxu0 0
    %359 = vmatprep.subr.bf16.mxu0 0
    %360 = vmatpush1.bf16.msra.mxu0 0
    %361 = vmatprep.mubr.bf16.mxu0 0
    %362 = vmatmul.mubr.bf16.gmra.mrb[0].mxu0 %v226
    %v363 = vpop.f32.mrb[0].mxu0
    %v364 = vadd.f32 %v129, %v363
    %v365 = vpop.f32.mrb[0].mxu0
    %v366 = vadd.f32 %v133, %v365
    %v367 = vpop.f32.mrb[0].mxu0
    %v368 = vpop.f32.mrb[0].mxu0
    %369 = vdwg.mxu0
    %v370 = vmax.f32 %v282, 0.0
    %v371 = vmax.f32 %v284, 0.0
    %v372 = vmax.f32 %v323, 0.0
    %v373 = vmax.f32 %v325, 0.0
    %v374 = vmax.f32 %v364, 0.0
    %v375 = vmax.f32 %v366, 0.0
    %v376 = vpack.c.bf16 %v370, %v370
    %v377 = vpack.c.bf16 %v371, %v371
    %v378 = vpack.c.bf16 %v372, %v372
    %v379 = vpack.c.bf16 %v373, %v373
    %v380 = vpack.c.bf16 %v374, %v374
    %v381 = vpack.c.bf16 %v375, %v375
    %v382 = vld [vmem:[#allocation3] sm:$0xff]
    %v383 = vld [vmem:[#allocation3 + $0x8] sm:$0xf]
    %v384 = vld [vmem:[#allocation3 + $0xc] sm:$0xff]
    %v385 = vld [vmem:[#allocation3 + $0x14] sm:$0xf]
    %v386 = vld [vmem:[#allocation3 + $0x18] sm:$0xff]
    %v387 = vld [vmem:[#allocation3 + $0x20] sm:$0xf]
    %v388 = vld [vmem:[#allocation3 + $0x24] sm:$0xff]
    %v389 = vld [vmem:[#allocation3 + $0x2c] sm:$0xf]
    %v390 = vld [vmem:[#allocation3 + $0x30] sm:$0xff]
    %v391 = vld [vmem:[#allocation3 + $0x38] sm:$0xf]
    %v392 = vld [vmem:[#allocation3 + $0x3c] sm:$0xff]
    %v393 = vld [vmem:[#allocation3 + $0x44] sm:$0xf]
    %v394 = vld [vmem:[#allocation3 + $0x48] sm:$0xff]
    %v395 = vld [vmem:[#allocation3 + $0x50] sm:$0xf]
    %v396 = vld [vmem:[#allocation3 + $0x54] sm:$0xff]
    %v397 = vld [vmem:[#allocation3 + $0x5c] sm:$0xf]
    %v398 = vld [vmem:[#allocation3 + $0x60] sm:$0xff]
    %v399 = vld [vmem:[#allocation3 + $0x68] sm:$0xf]
    %v400 = vld [vmem:[#allocation3 + $0x6c] sm:$0xff]
    %v401 = vld [vmem:[#allocation3 + $0x74] sm:$0xf]
    %v402 = vld [vmem:[#allocation3 + $0x78] sm:$0xff]
    %v403 = vld [vmem:[#allocation3 + $0x80] sm:$0xf]
    %v404 = vld [vmem:[#allocation3 + $0x84] sm:$0xff]
    %v405 = vld [vmem:[#allocation3 + $0x8c] sm:$0xf]
    %v406 = vld [vmem:[#allocation3 + $0x90] sm:$0xff]
    %v407 = vld [vmem:[#allocation3 + $0x98] sm:$0xf]
    %v408 = vld [vmem:[#allocation3 + $0x9c] sm:$0xff]
    %v409 = vld [vmem:[#allocation3 + $0xa4] sm:$0xf]
    %v410 = vld [vmem:[#allocation3 + $0xa8] sm:$0xff]
    %v411 = vld [vmem:[#allocation3 + $0xb0] sm:$0xf]
    %v412 = vld [vmem:[#allocation3 + $0xb4] sm:$0xff]
    %v413 = vld [vmem:[#allocation3 + $0xbc] sm:$0xf]
    %v414 = vld [vmem:[#allocation3 + $0xc0] sm:$0xff]
    %v415 = vld [vmem:[#allocation3 + $0xc8] sm:$0xf]
    %v416 = vld [vmem:[#allocation3 + $0xcc] sm:$0xff]
    %v417 = vld [vmem:[#allocation3 + $0xd4] sm:$0xf]
    %v418 = vld [vmem:[#allocation3 + $0xd8] sm:$0xff]
    %v419 = vld [vmem:[#allocation3 + $0xe0] sm:$0xf]
    %v420 = vld [vmem:[#allocation3 + $0xe4] sm:$0xff]
    %v421 = vld [vmem:[#allocation3 + $0xec] sm:$0xf]
    %v422 = vld [vmem:[#allocation3 + $0xf0] sm:$0xff]
    %v423 = vld [vmem:[#allocation3 + $0xf8] sm:$0xf]
    %v424 = vld [vmem:[#allocation3 + $0xfc] sm:$0xff]
    %v425 = vld [vmem:[#allocation3 + $0x104] sm:$0xf]
    %v426 = vld [vmem:[#allocation3 + $0x108] sm:$0xff]
    %v427 = vld [vmem:[#allocation3 + $0x110] sm:$0xf]
    %v428 = vld [vmem:[#allocation3 + $0x114] sm:$0xff]
    %v429 = vld [vmem:[#allocation3 + $0x11c] sm:$0xf]
    %v430 = vld [vmem:[#allocation3 + $0x120] sm:$0xff]
    %v431 = vld [vmem:[#allocation3 + $0x128] sm:$0xf]
    %v432 = vld [vmem:[#allocation3 + $0x12c] sm:$0xff]
    %v433 = vld [vmem:[#allocation3 + $0x134] sm:$0xf]
    %v434 = vld [vmem:[#allocation3 + $0x138] sm:$0xff]
    %v435 = vld [vmem:[#allocation3 + $0x140] sm:$0xf]
    %v436 = vld [vmem:[#allocation3 + $0x144] sm:$0xff]
    %v437 = vld [vmem:[#allocation3 + $0x14c] sm:$0xf]
    %v438 = vld [vmem:[#allocation3 + $0x150] sm:$0xff]
    %v439 = vld [vmem:[#allocation3 + $0x158] sm:$0xf]
    %v440 = vld [vmem:[#allocation3 + $0x15c] sm:$0xff]
    %v441 = vld [vmem:[#allocation3 + $0x164] sm:$0xf]
    %v442 = vld [vmem:[#allocation3 + $0x168] sm:$0xff]
    %v443 = vld [vmem:[#allocation3 + $0x170] sm:$0xf]
    %v444 = vld [vmem:[#allocation3 + $0x174] sm:$0xff]
    %v445 = vld [vmem:[#allocation3 + $0x17c] sm:$0xf]
    %v446 = vld [vmem:[#allocation3 + $0x180] sm:$0xff]
    %v447 = vld [vmem:[#allocation3 + $0x188] sm:$0xf]
    %v448 = vld [vmem:[#allocation3 + $0x18c] sm:$0xff]
    %v449 = vld [vmem:[#allocation3 + $0x194] sm:$0xf]
    %v450 = vld [vmem:[#allocation3 + $0x198] sm:$0xff]
    %v451 = vld [vmem:[#allocation3 + $0x1a0] sm:$0xf]
    %v452 = vld [vmem:[#allocation3 + $0x1a4] sm:$0xff]
    %v453 = vld [vmem:[#allocation3 + $0x1ac] sm:$0xf]
    %v454 = vld [vmem:[#allocation3 + $0x1b0] sm:$0xff]
    %v455 = vld [vmem:[#allocation3 + $0x1b8] sm:$0xf]
    %v456 = vld [vmem:[#allocation3 + $0x1bc] sm:$0xff]
    %v457 = vld [vmem:[#allocation3 + $0x1c4] sm:$0xf]
    %v458 = vld [vmem:[#allocation3 + $0x1c8] sm:$0xff]
    %v459 = vld [vmem:[#allocation3 + $0x1d0] sm:$0xf]
    %v460 = vld [vmem:[#allocation3 + $0x1d4] sm:$0xff]
    %v461 = vld [vmem:[#allocation3 + $0x1dc] sm:$0xf]
    %v462 = vld [vmem:[#allocation3 + $0x1e0] sm:$0xff]
    %v463 = vld [vmem:[#allocation3 + $0x1e8] sm:$0xf]
    %v464 = vld [vmem:[#allocation3 + $0x1ec] sm:$0xff]
    %v465 = vld [vmem:[#allocation3 + $0x1f4] sm:$0xf]
    %v466 = vld [vmem:[#allocation3 + $0x1f8] sm:$0xff]
    %v467 = vld [vmem:[#allocation3 + $0x200] sm:$0xf]
    %v468 = vld [vmem:[#allocation3 + $0x204] sm:$0xff]
    %v469 = vld [vmem:[#allocation3 + $0x20c] sm:$0xf]
    %v470 = vld [vmem:[#allocation3 + $0x210] sm:$0xff]
    %v471 = vld [vmem:[#allocation3 + $0x218] sm:$0xf]
    %v472 = vld [vmem:[#allocation3 + $0x21c] sm:$0xff]
    %v473 = vld [vmem:[#allocation3 + $0x224] sm:$0xf]
    %v474 = vld [vmem:[#allocation3 + $0x228] sm:$0xff]
    %v475 = vld [vmem:[#allocation3 + $0x230] sm:$0xf]
    %v476 = vld [vmem:[#allocation3 + $0x234] sm:$0xff]
    %v477 = vld [vmem:[#allocation3 + $0x23c] sm:$0xf]
    %v478 = vld [vmem:[#allocation3 + $0x240] sm:$0xff]
    %v479 = vld [vmem:[#allocation3 + $0x248] sm:$0xf]
    %v480 = vld [vmem:[#allocation3 + $0x24c] sm:$0xff]
    %v481 = vld [vmem:[#allocation3 + $0x254] sm:$0xf]
    %v482 = vld [vmem:[#allocation3 + $0x258] sm:$0xff]
    %v483 = vld [vmem:[#allocation3 + $0x260] sm:$0xf]
    %v484 = vld [vmem:[#allocation3 + $0x264] sm:$0xff]
    %v485 = vld [vmem:[#allocation3 + $0x26c] sm:$0xf]
    %v486 = vld [vmem:[#allocation3 + $0x270] sm:$0xff]
    %v487 = vld [vmem:[#allocation3 + $0x278] sm:$0xf]
    %v488 = vld [vmem:[#allocation3 + $0x27c] sm:$0xff]
    %v489 = vld [vmem:[#allocation3 + $0x284] sm:$0xf]
    %v490 = vld [vmem:[#allocation3 + $0x288] sm:$0xff]
    %v491 = vld [vmem:[#allocation3 + $0x290] sm:$0xf]
    %v492 = vld [vmem:[#allocation3 + $0x294] sm:$0xff]
    %v493 = vld [vmem:[#allocation3 + $0x29c] sm:$0xf]
    %v494 = vld [vmem:[#allocation3 + $0x2a0] sm:$0xff]
    %v495 = vld [vmem:[#allocation3 + $0x2a8] sm:$0xf]
    %v496 = vld [vmem:[#allocation3 + $0x2ac] sm:$0xff]
    %v497 = vld [vmem:[#allocation3 + $0x2b4] sm:$0xf]
    %v498 = vld [vmem:[#allocation3 + $0x2b8] sm:$0xff]
    %v499 = vld [vmem:[#allocation3 + $0x2c0] sm:$0xf]
    %v500 = vld [vmem:[#allocation3 + $0x2c4] sm:$0xff]
    %v501 = vld [vmem:[#allocation3 + $0x2cc] sm:$0xf]
    %v502 = vld [vmem:[#allocation3 + $0x2d0] sm:$0xff]
    %v503 = vld [vmem:[#allocation3 + $0x2d8] sm:$0xf]
    %v504 = vld [vmem:[#allocation3 + $0x2dc] sm:$0xff]
    %v505 = vld [vmem:[#allocation3 + $0x2e4] sm:$0xf]
    %v506 = vld [vmem:[#allocation3 + $0x2e8] sm:$0xff]
    %v507 = vld [vmem:[#allocation3 + $0x2f0] sm:$0xf]
    %v508 = vld [vmem:[#allocation3 + $0x2f4] sm:$0xff]
    %v509 = vld [vmem:[#allocation3 + $0x2fc] sm:$0xf]
    %v510 = vld [vmem:[#allocation3 + $0x300] sm:$0xff]
    %v511 = vld [vmem:[#allocation3 + $0x308] sm:$0xf]
    %v512 = vld [vmem:[#allocation3 + $0x30c] sm:$0xff]
    %v513 = vld [vmem:[#allocation3 + $0x314] sm:$0xf]
    %v514 = vld [vmem:[#allocation3 + $0x318] sm:$0xff]
    %v515 = vld [vmem:[#allocation3 + $0x320] sm:$0xf]
    %v516 = vld [vmem:[#allocation3 + $0x324] sm:$0xff]
    %v517 = vld [vmem:[#allocation3 + $0x32c] sm:$0xf]
    %v518 = vld [vmem:[#allocation3 + $0x330] sm:$0xff]
    %v519 = vld [vmem:[#allocation3 + $0x338] sm:$0xf]
    %v520 = vld [vmem:[#allocation3 + $0x33c] sm:$0xff]
    %v521 = vld [vmem:[#allocation3 + $0x344] sm:$0xf]
    %v522 = vld [vmem:[#allocation3 + $0x348] sm:$0xff]
    %v523 = vld [vmem:[#allocation3 + $0x350] sm:$0xf]
    %v524 = vld [vmem:[#allocation3 + $0x354] sm:$0xff]
    %v525 = vld [vmem:[#allocation3 + $0x35c] sm:$0xf]
    %v526 = vld [vmem:[#allocation3 + $0x360] sm:$0xff]
    %v527 = vld [vmem:[#allocation3 + $0x368] sm:$0xf]
    %v528 = vld [vmem:[#allocation3 + $0x36c] sm:$0xff]
    %v529 = vld [vmem:[#allocation3 + $0x374] sm:$0xf]
    %v530 = vld [vmem:[#allocation3 + $0x378] sm:$0xff]
    %v531 = vld [vmem:[#allocation3 + $0x380] sm:$0xf]
    %v532 = vld [vmem:[#allocation3 + $0x384] sm:$0xff]
    %v533 = vld [vmem:[#allocation3 + $0x38c] sm:$0xf]
    %v534 = vld [vmem:[#allocation3 + $0x390] sm:$0xff]
    %v535 = vld [vmem:[#allocation3 + $0x398] sm:$0xf]
    %v536 = vld [vmem:[#allocation3 + $0x39c] sm:$0xff]
    %v537 = vld [vmem:[#allocation3 + $0x3a4] sm:$0xf]
    %v538 = vld [vmem:[#allocation3 + $0x3a8] sm:$0xff]
    %v539 = vld [vmem:[#allocation3 + $0x3b0] sm:$0xf]
    %v540 = vld [vmem:[#allocation3 + $0x3b4] sm:$0xff]
    %v541 = vld [vmem:[#allocation3 + $0x3bc] sm:$0xf]
    %v542 = vld [vmem:[#allocation3 + $0x3c0] sm:$0xff]
    %v543 = vld [vmem:[#allocation3 + $0x3c8] sm:$0xf]
    %v544 = vld [vmem:[#allocation3 + $0x3cc] sm:$0xff]
    %v545 = vld [vmem:[#allocation3 + $0x3d4] sm:$0xf]
    %v546 = vld [vmem:[#allocation3 + $0x3d8] sm:$0xff]
    %v547 = vld [vmem:[#allocation3 + $0x3e0] sm:$0xf]
    %v548 = vld [vmem:[#allocation3 + $0x3e4] sm:$0xff]
    %v549 = vld [vmem:[#allocation3 + $0x3ec] sm:$0xf]
    %v550 = vld [vmem:[#allocation3 + $0x3f0] sm:$0xff]
    %v551 = vld [vmem:[#allocation3 + $0x3f8] sm:$0xf]
    %v552 = vld [vmem:[#allocation3 + $0x3fc] sm:$0xff]
    %v553 = vld [vmem:[#allocation3 + $0x404] sm:$0xf]
    %v554 = vld [vmem:[#allocation3 + $0x408] sm:$0xff]
    %v555 = vld [vmem:[#allocation3 + $0x410] sm:$0xf]
    %v556 = vld [vmem:[#allocation3 + $0x414] sm:$0xff]
    %v557 = vld [vmem:[#allocation3 + $0x41c] sm:$0xf]
    %v558 = vld [vmem:[#allocation3 + $0x420] sm:$0xff]
    %v559 = vld [vmem:[#allocation3 + $0x428] sm:$0xf]
    %v560 = vld [vmem:[#allocation3 + $0x42c] sm:$0xff]
    %v561 = vld [vmem:[#allocation3 + $0x434] sm:$0xf]
    %v562 = vld [vmem:[#allocation3 + $0x438] sm:$0xff]
    %v563 = vld [vmem:[#allocation3 + $0x440] sm:$0xf]
    %v564 = vld [vmem:[#allocation3 + $0x444] sm:$0xff]
    %v565 = vld [vmem:[#allocation3 + $0x44c] sm:$0xf]
    %v566 = vld [vmem:[#allocation3 + $0x450] sm:$0xff]
    %v567 = vld [vmem:[#allocation3 + $0x458] sm:$0xf]
    %v568 = vld [vmem:[#allocation3 + $0x45c] sm:$0xff]
    %v569 = vld [vmem:[#allocation3 + $0x464] sm:$0xf]
    %v570 = vld [vmem:[#allocation3 + $0x468] sm:$0xff]
    %v571 = vld [vmem:[#allocation3 + $0x470] sm:$0xf]
    %v572 = vld [vmem:[#allocation3 + $0x474] sm:$0xff]
    %v573 = vld [vmem:[#allocation3 + $0x47c] sm:$0xf]
    %v574 = vld [vmem:[%s4] sm:$0x7]
    %v576 = vlaneseq
    %v577 = vshrl.u32 %v576, 7
    %v578 = vsub.s32 0, %v577
    %v579 = vrot.slane %v574, %v578
    %v580 = vlaneseq
    %v581 = vshrl.u32 %v580, 7
    %v582 = vsub.s32 1, %v581
    %v583 = vrot.slane %v574, %v582
    %v584 = vlaneseq
    %v585 = vshrl.u32 %v584, 7
    %v586 = vsub.s32 2, %v585
    %v587 = vrot.slane %v574, %v586
    %v783 = vunpack.c.l.b16 %v382
    %v784 = vunpack.c.h.b16 %v382
    %v785 = vunpack.c.l.b16 %v383
    %v786 = vunpack.c.l.b16 %v384
    %v787 = vunpack.c.h.b16 %v384
    %v788 = vunpack.c.l.b16 %v385
    %v789 = vunpack.c.l.b16 %v386
    %v790 = vunpack.c.h.b16 %v386
    %v791 = vunpack.c.l.b16 %v387
    %v792 = vunpack.c.l.b16 %v388
    %v793 = vunpack.c.h.b16 %v388
    %v794 = vunpack.c.l.b16 %v389
    %v795 = vunpack.c.l.b16 %v390
    %v796 = vunpack.c.h.b16 %v390
    %v797 = vunpack.c.l.b16 %v391
    %v798 = vunpack.c.l.b16 %v392
    %v799 = vunpack.c.h.b16 %v392
    %v800 = vunpack.c.l.b16 %v393
    %v801 = vunpack.c.l.b16 %v394
    %v802 = vunpack.c.h.b16 %v394
    %v803 = vunpack.c.l.b16 %v395
    %v804 = vunpack.c.l.b16 %v396
    %v805 = vunpack.c.h.b16 %v396
    %v806 = vunpack.c.l.b16 %v397
    %v807 = vunpack.c.l.b16 %v398
    %v808 = vunpack.c.h.b16 %v398
    %v809 = vunpack.c.l.b16 %v399
    %v810 = vunpack.c.l.b16 %v400
    %v811 = vunpack.c.h.b16 %v400
    %v812 = vunpack.c.l.b16 %v401
    %v813 = vunpack.c.l.b16 %v402
    %v814 = vunpack.c.h.b16 %v402
    %v815 = vunpack.c.l.b16 %v403
    %v816 = vunpack.c.l.b16 %v404
    %v817 = vunpack.c.h.b16 %v404
    %v818 = vunpack.c.l.b16 %v405
    %v819 = vunpack.c.l.b16 %v406
    %v820 = vunpack.c.h.b16 %v406
    %v821 = vunpack.c.l.b16 %v407
    %v822 = vunpack.c.l.b16 %v408
    %v823 = vunpack.c.h.b16 %v408
    %v824 = vunpack.c.l.b16 %v409
    %v825 = vunpack.c.l.b16 %v410
    %v826 = vunpack.c.h.b16 %v410
    %v827 = vunpack.c.l.b16 %v411
    %v828 = vunpack.c.l.b16 %v412
    %v829 = vunpack.c.h.b16 %v412
    %v830 = vunpack.c.l.b16 %v413
    %v831 = vunpack.c.l.b16 %v414
    %v832 = vunpack.c.h.b16 %v414
    %v833 = vunpack.c.l.b16 %v415
    %v834 = vunpack.c.l.b16 %v416
    %v835 = vunpack.c.h.b16 %v416
    %v836 = vunpack.c.l.b16 %v417
    %v837 = vunpack.c.l.b16 %v418
    %v838 = vunpack.c.h.b16 %v418
    %v839 = vunpack.c.l.b16 %v419
    %v840 = vunpack.c.l.b16 %v420
    %v841 = vunpack.c.h.b16 %v420
    %v842 = vunpack.c.l.b16 %v421
    %v843 = vunpack.c.l.b16 %v422
    %v844 = vunpack.c.h.b16 %v422
    %v845 = vunpack.c.l.b16 %v423
    %v846 = vunpack.c.l.b16 %v424
    %v847 = vunpack.c.h.b16 %v424
    %v848 = vunpack.c.l.b16 %v425
    %v849 = vunpack.c.l.b16 %v426
    %v850 = vunpack.c.h.b16 %v426
    %v851 = vunpack.c.l.b16 %v427
    %v852 = vunpack.c.l.b16 %v428
    %v853 = vunpack.c.h.b16 %v428
    %v854 = vunpack.c.l.b16 %v429
    %v855 = vunpack.c.l.b16 %v430
    %v856 = vunpack.c.h.b16 %v430
    %v857 = vunpack.c.l.b16 %v431
    %v858 = vunpack.c.l.b16 %v432
    %v859 = vunpack.c.h.b16 %v432
    %v860 = vunpack.c.l.b16 %v433
    %v861 = vunpack.c.l.b16 %v434
    %v862 = vunpack.c.h.b16 %v434
    %v863 = vunpack.c.l.b16 %v435
    %v864 = vunpack.c.l.b16 %v436
    %v865 = vunpack.c.h.b16 %v436
    %v866 = vunpack.c.l.b16 %v437
    %v867 = vunpack.c.l.b16 %v438
    %v868 = vunpack.c.h.b16 %v438
    %v869 = vunpack.c.l.b16 %v439
    %v870 = vunpack.c.l.b16 %v440
    %v871 = vunpack.c.h.b16 %v440
    %v872 = vunpack.c.l.b16 %v441
    %v873 = vunpack.c.l.b16 %v442
    %v874 = vunpack.c.h.b16 %v442
    %v875 = vunpack.c.l.b16 %v443
    %v876 = vunpack.c.l.b16 %v444
    %v877 = vunpack.c.h.b16 %v444
    %v878 = vunpack.c.l.b16 %v445
    %v879 = vunpack.c.l.b16 %v446
    %v880 = vunpack.c.h.b16 %v446
    %v881 = vunpack.c.l.b16 %v447
    %v882 = vunpack.c.l.b16 %v448
    %v883 = vunpack.c.h.b16 %v448
    %v884 = vunpack.c.l.b16 %v449
    %v885 = vunpack.c.l.b16 %v450
    %v886 = vunpack.c.h.b16 %v450
    %v887 = vunpack.c.l.b16 %v451
    %v888 = vunpack.c.l.b16 %v452
    %v889 = vunpack.c.h.b16 %v452
    %v890 = vunpack.c.l.b16 %v453
    %v891 = vunpack.c.l.b16 %v454
    %v892 = vunpack.c.h.b16 %v454
    %v893 = vunpack.c.l.b16 %v455
    %v894 = vunpack.c.l.b16 %v456
    %v895 = vunpack.c.h.b16 %v456
    %v896 = vunpack.c.l.b16 %v457
    %v897 = vunpack.c.l.b16 %v458
    %v898 = vunpack.c.h.b16 %v458
    %v899 = vunpack.c.l.b16 %v459
    %v900 = vunpack.c.l.b16 %v460
    %v901 = vunpack.c.h.b16 %v460
    %v902 = vunpack.c.l.b16 %v461
    %v903 = vunpack.c.l.b16 %v462
    %v904 = vunpack.c.h.b16 %v462
    %v905 = vunpack.c.l.b16 %v463
    %v906 = vunpack.c.l.b16 %v464
    %v907 = vunpack.c.h.b16 %v464
    %v908 = vunpack.c.l.b16 %v465
    %v909 = vunpack.c.l.b16 %v466
    %v910 = vunpack.c.h.b16 %v466
    %v911 = vunpack.c.l.b16 %v467
    %v912 = vunpack.c.l.b16 %v468
    %v913 = vunpack.c.h.b16 %v468
    %v914 = vunpack.c.l.b16 %v469
    %v915 = vunpack.c.l.b16 %v470
    %v916 = vunpack.c.h.b16 %v470
    %v917 = vunpack.c.l.b16 %v471
    %v918 = vunpack.c.l.b16 %v472
    %v919 = vunpack.c.h.b16 %v472
    %v920 = vunpack.c.l.b16 %v473
    %v921 = vunpack.c.l.b16 %v474
    %v922 = vunpack.c.h.b16 %v474
    %v923 = vunpack.c.l.b16 %v475
    %v924 = vunpack.c.l.b16 %v476
    %v925 = vunpack.c.h.b16 %v476
    %v926 = vunpack.c.l.b16 %v477
    %v927 = vunpack.c.l.b16 %v478
    %v928 = vunpack.c.h.b16 %v478
    %v929 = vunpack.c.l.b16 %v479
    %v930 = vunpack.c.l.b16 %v480
    %v931 = vunpack.c.h.b16 %v480
    %v932 = vunpack.c.l.b16 %v481
    %v933 = vunpack.c.l.b16 %v482
    %v934 = vunpack.c.h.b16 %v482
    %v935 = vunpack.c.l.b16 %v483
    %v936 = vunpack.c.l.b16 %v484
    %v937 = vunpack.c.h.b16 %v484
    %v938 = vunpack.c.l.b16 %v485
    %v939 = vunpack.c.l.b16 %v486
    %v940 = vunpack.c.h.b16 %v486
    %v941 = vunpack.c.l.b16 %v487
    %v942 = vunpack.c.l.b16 %v488
    %v943 = vunpack.c.h.b16 %v488
    %v944 = vunpack.c.l.b16 %v489
    %v945 = vunpack.c.l.b16 %v490
    %v946 = vunpack.c.h.b16 %v490
    %v947 = vunpack.c.l.b16 %v491
    %v948 = vunpack.c.l.b16 %v492
    %v949 = vunpack.c.h.b16 %v492
    %v950 = vunpack.c.l.b16 %v493
    %v951 = vunpack.c.l.b16 %v494
    %v952 = vunpack.c.h.b16 %v494
    %v953 = vunpack.c.l.b16 %v495
    %v954 = vunpack.c.l.b16 %v496
    %v955 = vunpack.c.h.b16 %v496
    %v956 = vunpack.c.l.b16 %v497
    %v957 = vunpack.c.l.b16 %v498
    %v958 = vunpack.c.h.b16 %v498
    %v959 = vunpack.c.l.b16 %v499
    %v960 = vunpack.c.l.b16 %v500
    %v961 = vunpack.c.h.b16 %v500
    %v962 = vunpack.c.l.b16 %v501
    %v963 = vunpack.c.l.b16 %v502
    %v964 = vunpack.c.h.b16 %v502
    %v965 = vunpack.c.l.b16 %v503
    %v966 = vunpack.c.l.b16 %v504
    %v967 = vunpack.c.h.b16 %v504
    %v968 = vunpack.c.l.b16 %v505
    %v969 = vunpack.c.l.b16 %v506
    %v970 = vunpack.c.h.b16 %v506
    %v971 = vunpack.c.l.b16 %v507
    %v972 = vunpack.c.l.b16 %v508
    %v973 = vunpack.c.h.b16 %v508
    %v974 = vunpack.c.l.b16 %v509
    %v975 = vunpack.c.l.b16 %v510
    %v976 = vunpack.c.h.b16 %v510
    %v977 = vunpack.c.l.b16 %v511
    %v978 = vunpack.c.l.b16 %v512
    %v979 = vunpack.c.h.b16 %v512
    %v980 = vunpack.c.l.b16 %v513
    %v981 = vunpack.c.l.b16 %v514
    %v982 = vunpack.c.h.b16 %v514
    %v983 = vunpack.c.l.b16 %v515
    %v984 = vunpack.c.l.b16 %v516
    %v985 = vunpack.c.h.b16 %v516
    %v986 = vunpack.c.l.b16 %v517
    %v987 = vunpack.c.l.b16 %v518
    %v988 = vunpack.c.h.b16 %v518
    %v989 = vunpack.c.l.b16 %v519
    %v990 = vunpack.c.l.b16 %v520
    %v991 = vunpack.c.h.b16 %v520
    %v992 = vunpack.c.l.b16 %v521
    %v993 = vunpack.c.l.b16 %v522
    %v994 = vunpack.c.h.b16 %v522
    %v995 = vunpack.c.l.b16 %v523
    %v996 = vunpack.c.l.b16 %v524
    %v997 = vunpack.c.h.b16 %v524
    %v998 = vunpack.c.l.b16 %v525
    %v999 = vunpack.c.l.b16 %v526
    %v1000 = vunpack.c.h.b16 %v526
    %v1001 = vunpack.c.l.b16 %v527
    %v1002 = vunpack.c.l.b16 %v528
    %v1003 = vunpack.c.h.b16 %v528
    %v1004 = vunpack.c.l.b16 %v529
    %v1005 = vunpack.c.l.b16 %v530
    %v1006 = vunpack.c.h.b16 %v530
    %v1007 = vunpack.c.l.b16 %v531
    %v1008 = vunpack.c.l.b16 %v532
    %v1009 = vunpack.c.h.b16 %v532
    %v1010 = vunpack.c.l.b16 %v533
    %v1011 = vunpack.c.l.b16 %v534
    %v1012 = vunpack.c.h.b16 %v534
    %v1013 = vunpack.c.l.b16 %v535
    %v1014 = vunpack.c.l.b16 %v536
    %v1015 = vunpack.c.h.b16 %v536
    %v1016 = vunpack.c.l.b16 %v537
    %v1017 = vunpack.c.l.b16 %v538
    %v1018 = vunpack.c.h.b16 %v538
    %v1019 = vunpack.c.l.b16 %v539
    %v1020 = vunpack.c.l.b16 %v540
    %v1021 = vunpack.c.h.b16 %v540
    %v1022 = vunpack.c.l.b16 %v541
    %v1023 = vunpack.c.l.b16 %v542
    %v1024 = vunpack.c.h.b16 %v542
    %v1025 = vunpack.c.l.b16 %v543
    %v1026 = vunpack.c.l.b16 %v544
    %v1027 = vunpack.c.h.b16 %v544
    %v1028 = vunpack.c.l.b16 %v545
    %v1029 = vunpack.c.l.b16 %v546
    %v1030 = vunpack.c.h.b16 %v546
    %v1031 = vunpack.c.l.b16 %v547
    %v1032 = vunpack.c.l.b16 %v548
    %v1033 = vunpack.c.h.b16 %v548
    %v1034 = vunpack.c.l.b16 %v549
    %v1035 = vunpack.c.l.b16 %v550
    %v1036 = vunpack.c.h.b16 %v550
    %v1037 = vunpack.c.l.b16 %v551
    %v1038 = vunpack.c.l.b16 %v552
    %v1039 = vunpack.c.h.b16 %v552
    %v1040 = vunpack.c.l.b16 %v553
    %v1041 = vunpack.c.l.b16 %v554
    %v1042 = vunpack.c.h.b16 %v554
    %v1043 = vunpack.c.l.b16 %v555
    %v1044 = vunpack.c.l.b16 %v556
    %v1045 = vunpack.c.h.b16 %v556
    %v1046 = vunpack.c.l.b16 %v557
    %v1047 = vunpack.c.l.b16 %v558
    %v1048 = vunpack.c.h.b16 %v558
    %v1049 = vunpack.c.l.b16 %v559
    %v1050 = vunpack.c.l.b16 %v560
    %v1051 = vunpack.c.h.b16 %v560
    %v1052 = vunpack.c.l.b16 %v561
    %v1053 = vunpack.c.l.b16 %v562
    %v1054 = vunpack.c.h.b16 %v562
    %v1055 = vunpack.c.l.b16 %v563
    %v1056 = vunpack.c.l.b16 %v564
    %v1057 = vunpack.c.h.b16 %v564
    %v1058 = vunpack.c.l.b16 %v565
    %v1059 = vunpack.c.l.b16 %v566
    %v1060 = vunpack.c.h.b16 %v566
    %v1061 = vunpack.c.l.b16 %v567
    %v1062 = vunpack.c.l.b16 %v568
    %v1063 = vunpack.c.h.b16 %v568
    %v1064 = vunpack.c.l.b16 %v569
    %v1065 = vunpack.c.l.b16 %v570
    %v1066 = vunpack.c.h.b16 %v570
    %v1067 = vunpack.c.l.b16 %v571
    %v1068 = vunpack.c.l.b16 %v572
    %v1069 = vunpack.c.h.b16 %v572
    %v1070 = vunpack.c.l.b16 %v573
    %v1071 = vpack.c.b16 %v786, %v783
    %v1072 = vpack.c.b16 %v787, %v784
    %v1073 = vpack.c.b16 %v788, %v785
    %v1074 = vpack.c.b16 %v792, %v789
    %v1075 = vpack.c.b16 %v793, %v790
    %v1076 = vpack.c.b16 %v794, %v791
    %v1077 = vpack.c.b16 %v798, %v795
    %v1078 = vpack.c.b16 %v799, %v796
    %v1079 = vpack.c.b16 %v800, %v797
    %v1080 = vpack.c.b16 %v804, %v801
    %v1081 = vpack.c.b16 %v805, %v802
    %v1082 = vpack.c.b16 %v806, %v803
    %v1083 = vpack.c.b16 %v810, %v807
    %v1084 = vpack.c.b16 %v811, %v808
    %v1085 = vpack.c.b16 %v812, %v809
    %v1086 = vpack.c.b16 %v816, %v813
    %v1087 = vpack.c.b16 %v817, %v814
    %v1088 = vpack.c.b16 %v818, %v815
    %v1089 = vpack.c.b16 %v822, %v819
    %v1090 = vpack.c.b16 %v823, %v820
    %v1091 = vpack.c.b16 %v824, %v821
    %v1092 = vpack.c.b16 %v828, %v825
    %v1093 = vpack.c.b16 %v829, %v826
    %v1094 = vpack.c.b16 %v830, %v827
    %v1095 = vpack.c.b16 %v834, %v831
    %v1096 = vpack.c.b16 %v835, %v832
    %v1097 = vpack.c.b16 %v836, %v833
    %v1098 = vpack.c.b16 %v840, %v837
    %v1099 = vpack.c.b16 %v841, %v838
    %v1100 = vpack.c.b16 %v842, %v839
    %v1101 = vpack.c.b16 %v846, %v843
    %v1102 = vpack.c.b16 %v847, %v844
    %v1103 = vpack.c.b16 %v848, %v845
    %v1104 = vpack.c.b16 %v852, %v849
    %v1105 = vpack.c.b16 %v853, %v850
    %v1106 = vpack.c.b16 %v854, %v851
    %v1107 = vpack.c.b16 %v858, %v855
    %v1108 = vpack.c.b16 %v859, %v856
    %v1109 = vpack.c.b16 %v860, %v857
    %v1110 = vpack.c.b16 %v864, %v861
    %v1111 = vpack.c.b16 %v865, %v862
    %v1112 = vpack.c.b16 %v866, %v863
    %v1113 = vpack.c.b16 %v870, %v867
    %v1114 = vpack.c.b16 %v871, %v868
    %v1115 = vpack.c.b16 %v872, %v869
    %v1116 = vpack.c.b16 %v876, %v873
    %v1117 = vpack.c.b16 %v877, %v874
    %v1118 = vpack.c.b16 %v878, %v875
    %v1119 = vpack.c.b16 %v882, %v879
    %v1120 = vpack.c.b16 %v883, %v880
    %v1121 = vpack.c.b16 %v884, %v881
    %v1122 = vpack.c.b16 %v888, %v885
    %v1123 = vpack.c.b16 %v889, %v886
    %v1124 = vpack.c.b16 %v890, %v887
    %v1125 = vpack.c.b16 %v894, %v891
    %v1126 = vpack.c.b16 %v895, %v892
    %v1127 = vpack.c.b16 %v896, %v893
    %v1128 = vpack.c.b16 %v900, %v897
    %v1129 = vpack.c.b16 %v901, %v898
    %v1130 = vpack.c.b16 %v902, %v899
    %v1131 = vpack.c.b16 %v906, %v903
    %v1132 = vpack.c.b16 %v907, %v904
    %v1133 = vpack.c.b16 %v908, %v905
    %v1134 = vpack.c.b16 %v912, %v909
    %v1135 = vpack.c.b16 %v913, %v910
    %v1136 = vpack.c.b16 %v914, %v911
    %v1137 = vpack.c.b16 %v918, %v915
    %v1138 = vpack.c.b16 %v919, %v916
    %v1139 = vpack.c.b16 %v920, %v917
    %v1140 = vpack.c.b16 %v924, %v921
    %v1141 = vpack.c.b16 %v925, %v922
    %v1142 = vpack.c.b16 %v926, %v923
    %v1143 = vpack.c.b16 %v930, %v927
    %v1144 = vpack.c.b16 %v931, %v928
    %v1145 = vpack.c.b16 %v932, %v929
    %v1146 = vpack.c.b16 %v936, %v933
    %v1147 = vpack.c.b16 %v937, %v934
    %v1148 = vpack.c.b16 %v938, %v935
    %v1149 = vpack.c.b16 %v942, %v939
    %v1150 = vpack.c.b16 %v943, %v940
    %v1151 = vpack.c.b16 %v944, %v941
    %v1152 = vpack.c.b16 %v948, %v945
    %v1153 = vpack.c.b16 %v949, %v946
    %v1154 = vpack.c.b16 %v950, %v947
    %v1155 = vpack.c.b16 %v954, %v951
    %v1156 = vpack.c.b16 %v955, %v952
    %v1157 = vpack.c.b16 %v956, %v953
    %v1158 = vpack.c.b16 %v960, %v957
    %v1159 = vpack.c.b16 %v961, %v958
    %v1160 = vpack.c.b16 %v962, %v959
    %v1161 = vpack.c.b16 %v966, %v963
    %v1162 = vpack.c.b16 %v967, %v964
    %v1163 = vpack.c.b16 %v968, %v965
    %v1164 = vpack.c.b16 %v972, %v969
    %v1165 = vpack.c.b16 %v973, %v970
    %v1166 = vpack.c.b16 %v974, %v971
    %v1167 = vpack.c.b16 %v978, %v975
    %v1168 = vpack.c.b16 %v979, %v976
    %v1169 = vpack.c.b16 %v980, %v977
    %v1170 = vpack.c.b16 %v984, %v981
    %v1171 = vpack.c.b16 %v985, %v982
    %v1172 = vpack.c.b16 %v986, %v983
    %v1173 = vpack.c.b16 %v990, %v987
    %v1174 = vpack.c.b16 %v991, %v988
    %v1175 = vpack.c.b16 %v992, %v989
    %v1176 = vpack.c.b16 %v996, %v993
    %v1177 = vpack.c.b16 %v997, %v994
    %v1178 = vpack.c.b16 %v998, %v995
    %v1179 = vpack.c.b16 %v1002, %v999
    %v1180 = vpack.c.b16 %v1003, %v1000
    %v1181 = vpack.c.b16 %v1004, %v1001
    %v1182 = vpack.c.b16 %v1008, %v1005
    %v1183 = vpack.c.b16 %v1009, %v1006
    %v1184 = vpack.c.b16 %v1010, %v1007
    %v1185 = vpack.c.b16 %v1014, %v1011
    %v1186 = vpack.c.b16 %v1015, %v1012
    %v1187 = vpack.c.b16 %v1016, %v1013
    %v1188 = vpack.c.b16 %v1020, %v1017
    %v1189 = vpack.c.b16 %v1021, %v1018
    %v1190 = vpack.c.b16 %v1022, %v1019
    %v1191 = vpack.c.b16 %v1026, %v1023
    %v1192 = vpack.c.b16 %v1027, %v1024
    %v1193 = vpack.c.b16 %v1028, %v1025
    %v1194 = vpack.c.b16 %v1032, %v1029
    %v1195 = vpack.c.b16 %v1033, %v1030
    %v1196 = vpack.c.b16 %v1034, %v1031
    %v1197 = vpack.c.b16 %v1038, %v1035
    %v1198 = vpack.c.b16 %v1039, %v1036
    %v1199 = vpack.c.b16 %v1040, %v1037
    %v1200 = vpack.c.b16 %v1044, %v1041
    %v1201 = vpack.c.b16 %v1045, %v1042
    %v1202 = vpack.c.b16 %v1046, %v1043
    %v1203 = vpack.c.b16 %v1050, %v1047
    %v1204 = vpack.c.b16 %v1051, %v1048
    %v1205 = vpack.c.b16 %v1052, %v1049
    %v1206 = vpack.c.b16 %v1056, %v1053
    %v1207 = vpack.c.b16 %v1057, %v1054
    %v1208 = vpack.c.b16 %v1058, %v1055
    %v1209 = vpack.c.b16 %v1062, %v1059
    %v1210 = vpack.c.b16 %v1063, %v1060
    %v1211 = vpack.c.b16 %v1064, %v1061
    %v1212 = vpack.c.b16 %v1068, %v1065
    %v1213 = vpack.c.b16 %v1069, %v1066
    %v1214 = vpack.c.b16 %v1070, %v1067
    %1359 = vmatprep.subr.bf16.mxu0 %v1072
    %1360 = vmatpush1.bf16.msra.mxu0 %v1071
    %1361 = vmatprep.subr.bf16.mxu0 %v1075
    %1362 = vmatpush1.bf16.msra.mxu0 %v1074
    %1363 = vmatprep.subr.bf16.mxu0 %v1078
    %1364 = vmatpush1.bf16.msra.mxu0 %v1077
    %1365 = vmatprep.subr.bf16.mxu0 %v1081
    %1366 = vmatpush1.bf16.msra.mxu0 %v1080
    %1367 = vmatprep.subr.bf16.mxu0 %v1084
    %1368 = vmatpush1.bf16.msra.mxu0 %v1083
    %1369 = vmatprep.subr.bf16.mxu0 %v1087
    %1370 = vmatpush1.bf16.msra.mxu0 %v1086
    %1371 = vmatprep.subr.bf16.mxu0 %v1090
    %1372 = vmatpush1.bf16.msra.mxu0 %v1089
    %1373 = vmatprep.subr.bf16.mxu0 %v1093
    %1374 = vmatpush1.bf16.msra.mxu0 %v1092
    %1375 = vmatprep.subr.bf16.mxu0 %v1096
    %1376 = vmatpush1.bf16.msra.mxu0 %v1095
    %1377 = vmatprep.subr.bf16.mxu0 %v1099
    %1378 = vmatpush1.bf16.msra.mxu0 %v1098
    %1379 = vmatprep.subr.bf16.mxu0 %v1102
    %1380 = vmatpush1.bf16.msra.mxu0 %v1101
    %1381 = vmatprep.subr.bf16.mxu0 %v1105
    %1382 = vmatpush1.bf16.msra.mxu0 %v1104
    %1383 = vmatprep.subr.bf16.mxu0 %v1108
    %1384 = vmatpush1.bf16.msra.mxu0 %v1107
    %1385 = vmatprep.subr.bf16.mxu0 %v1111
    %1386 = vmatpush1.bf16.msra.mxu0 %v1110
    %1387 = vmatprep.subr.bf16.mxu0 %v1114
    %1388 = vmatpush1.bf16.msra.mxu0 %v1113
    %1389 = vmatprep.subr.bf16.mxu0 %v1117
    %1390 = vmatpush1.bf16.msra.mxu0 %v1116
    %1391 = vmatprep.mubr.bf16.mxu0 %v377
    %1392 = vmatmul.mubr.bf16.gmra.mrb[0].mxu0 %v376
    %v1393 = vpop.f32.mrb[0].mxu0
    %v1394 = vadd.f32 %v579, %v1393
    %v1395 = vpop.f32.mrb[0].mxu0
    %v1396 = vadd.f32 %v583, %v1395
    %v1397 = vpop.f32.mrb[0].mxu0
    %v1398 = vpop.f32.mrb[0].mxu0
    %1399 = vdwg.mxu0
    %1400 = vmatprep.subr.bf16.mxu0 %v1120
    %1401 = vmatpush1.bf16.msra.mxu0 %v1119
    %1402 = vmatprep.subr.bf16.mxu0 %v1123
    %1403 = vmatpush1.bf16.msra.mxu0 %v1122
    %1404 = vmatprep.subr.bf16.mxu0 %v1126
    %1405 = vmatpush1.bf16.msra.mxu0 %v1125
    %1406 = vmatprep.subr.bf16.mxu0 %v1129
    %1407 = vmatpush1.bf16.msra.mxu0 %v1128
    %1408 = vmatprep.subr.bf16.mxu0 %v1132
    %1409 = vmatpush1.bf16.msra.mxu0 %v1131
    %1410 = vmatprep.subr.bf16.mxu0 %v1135
    %1411 = vmatpush1.bf16.msra.mxu0 %v1134
    %1412 = vmatprep.subr.bf16.mxu0 %v1138
    %1413 = vmatpush1.bf16.msra.mxu0 %v1137
    %1414 = vmatprep.subr.bf16.mxu0 %v1141
    %1415 = vmatpush1.bf16.msra.mxu0 %v1140
    %1416 = vmatprep.subr.bf16.mxu0 %v1144
    %1417 = vmatpush1.bf16.msra.mxu0 %v1143
    %1418 = vmatprep.subr.bf16.mxu0 %v1147
    %1419 = vmatpush1.bf16.msra.mxu0 %v1146
    %1420 = vmatprep.subr.bf16.mxu0 %v1150
    %1421 = vmatpush1.bf16.msra.mxu0 %v1149
    %1422 = vmatprep.subr.bf16.mxu0 %v1153
    %1423 = vmatpush1.bf16.msra.mxu0 %v1152
    %1424 = vmatprep.subr.bf16.mxu0 %v1156
    %1425 = vmatpush1.bf16.msra.mxu0 %v1155
    %1426 = vmatprep.subr.bf16.mxu0 %v1159
    %1427 = vmatpush1.bf16.msra.mxu0 %v1158
    %1428 = vmatprep.subr.bf16.mxu0 %v1162
    %1429 = vmatpush1.bf16.msra.mxu0 %v1161
    %1430 = vmatprep.subr.bf16.mxu0 %v1165
    %1431 = vmatpush1.bf16.msra.mxu0 %v1164
    %1432 = vmatprep.mubr.bf16.mxu0 %v379
    %1433 = vmatmul.mubr.bf16.gmra.mrb[0].mxu0 %v378
    %v1434 = vpop.f32.mrb[0].mxu0
    %v1435 = vadd.f32 %v1394, %v1434
    %v1436 = vpop.f32.mrb[0].mxu0
    %v1437 = vadd.f32 %v1396, %v1436
    %v1438 = vpop.f32.mrb[0].mxu0
    %v1439 = vpop.f32.mrb[0].mxu0
    %1440 = vdwg.mxu0
    %1441 = vmatprep.subr.bf16.mxu0 %v1168
    %1442 = vmatpush1.bf16.msra.mxu0 %v1167
    %1443 = vmatprep.subr.bf16.mxu0 %v1171
    %1444 = vmatpush1.bf16.msra.mxu0 %v1170
    %1445 = vmatprep.subr.bf16.mxu0 %v1174
    %1446 = vmatpush1.bf16.msra.mxu0 %v1173
    %1447 = vmatprep.subr.bf16.mxu0 %v1177
    %1448 = vmatpush1.bf16.msra.mxu0 %v1176
    %1449 = vmatprep.subr.bf16.mxu0 %v1180
    %1450 = vmatpush1.bf16.msra.mxu0 %v1179
    %1451 = vmatprep.subr.bf16.mxu0 %v1183
    %1452 = vmatpush1.bf16.msra.mxu0 %v1182
    %1453 = vmatprep.subr.bf16.mxu0 %v1186
    %1454 = vmatpush1.bf16.msra.mxu0 %v1185
    %1455 = vmatprep.subr.bf16.mxu0 %v1189
    %1456 = vmatpush1.bf16.msra.mxu0 %v1188
    %1457 = vmatprep.subr.bf16.mxu0 %v1192
    %1458 = vmatpush1.bf16.msra.mxu0 %v1191
    %1459 = vmatprep.subr.bf16.mxu0 %v1195
    %1460 = vmatpush1.bf16.msra.mxu0 %v1194
    %1461 = vmatprep.subr.bf16.mxu0 %v1198
    %1462 = vmatpush1.bf16.msra.mxu0 %v1197
    %1463 = vmatprep.subr.bf16.mxu0 %v1201
    %1464 = vmatpush1.bf16.msra.mxu0 %v1200
    %1465 = vmatprep.subr.bf16.mxu0 %v1204
    %1466 = vmatpush1.bf16.msra.mxu0 %v1203
    %1467 = vmatprep.subr.bf16.mxu0 %v1207
    %1468 = vmatpush1.bf16.msra.mxu0 %v1206
    %1469 = vmatprep.subr.bf16.mxu0 %v1210
    %1470 = vmatpush1.bf16.msra.mxu0 %v1209
    %1471 = vmatprep.subr.bf16.mxu0 %v1213
    %1472 = vmatpush1.bf16.msra.mxu0 %v1212
    %1473 = vmatprep.mubr.bf16.mxu0 %v381
    %1474 = vmatmul.mubr.bf16.gmra.mrb[0].mxu0 %v380
    %v1475 = vpop.f32.mrb[0].mxu0
    %v1476 = vadd.f32 %v1435, %v1475
    %v1477 = vpop.f32.mrb[0].mxu0
    %v1478 = vadd.f32 %v1437, %v1477
    %v1479 = vpop.f32.mrb[0].mxu0
    %v1480 = vpop.f32.mrb[0].mxu0
    %1481 = vdwg.mxu0
    %1482 = vmatprep.subr.bf16.mxu0 0
    %1483 = vmatpush1.bf16.msra.mxu0 %v1073
    %1484 = vmatprep.subr.bf16.mxu0 0
    %1485 = vmatpush1.bf16.msra.mxu0 %v1076
    %1486 = vmatprep.subr.bf16.mxu0 0
    %1487 = vmatpush1.bf16.msra.mxu0 %v1079
    %1488 = vmatprep.subr.bf16.mxu0 0
    %1489 = vmatpush1.bf16.msra.mxu0 %v1082
    %1490 = vmatprep.subr.bf16.mxu0 0
    %1491 = vmatpush1.bf16.msra.mxu0 %v1085
    %1492 = vmatprep.subr.bf16.mxu0 0
    %1493 = vmatpush1.bf16.msra.mxu0 %v1088
    %1494 = vmatprep.subr.bf16.mxu0 0
    %1495 = vmatpush1.bf16.msra.mxu0 %v1091
    %1496 = vmatprep.subr.bf16.mxu0 0
    %1497 = vmatpush1.bf16.msra.mxu0 %v1094
    %1498 = vmatprep.subr.bf16.mxu0 0
    %1499 = vmatpush1.bf16.msra.mxu0 %v1097
    %1500 = vmatprep.subr.bf16.mxu0 0
    %1501 = vmatpush1.bf16.msra.mxu0 %v1100
    %1502 = vmatprep.subr.bf16.mxu0 0
    %1503 = vmatpush1.bf16.msra.mxu0 %v1103
    %1504 = vmatprep.subr.bf16.mxu0 0
    %1505 = vmatpush1.bf16.msra.mxu0 %v1106
    %1506 = vmatprep.subr.bf16.mxu0 0
    %1507 = vmatpush1.bf16.msra.mxu0 %v1109
    %1508 = vmatprep.subr.bf16.mxu0 0
    %1509 = vmatpush1.bf16.msra.mxu0 %v1112
    %1510 = vmatprep.subr.bf16.mxu0 0
    %1511 = vmatpush1.bf16.msra.mxu0 %v1115
    %1512 = vmatprep.subr.bf16.mxu0 0
    %1513 = vmatpush1.bf16.msra.mxu0 %v1118
    %1514 = vmatprep.mubr.bf16.mxu0 %v377
    %1515 = vmatmul.mubr.bf16.gmra.mrb[0].mxu0 %v376
    %v1516 = vpop.f32.mrb[0].mxu0
    %v1517 = vadd.f32 %v587, %v1516
    %v1518 = vpop.f32.mrb[0].mxu0
    %v1519 = vpop.f32.mrb[0].mxu0
    %v1520 = vpop.f32.mrb[0].mxu0
    %1521 = vdwg.mxu0
    %1522 = vmatprep.subr.bf16.mxu0 0
    %1523 = vmatpush1.bf16.msra.mxu0 %v1121
    %1524 = vmatprep.subr.bf16.mxu0 0
    %1525 = vmatpush1.bf16.msra.mxu0 %v1124
    %1526 = vmatprep.subr.bf16.mxu0 0
    %1527 = vmatpush1.bf16.msra.mxu0 %v1127
    %1528 = vmatprep.subr.bf16.mxu0 0
    %1529 = vmatpush1.bf16.msra.mxu0 %v1130
    %1530 = vmatprep.subr.bf16.mxu0 0
    %1531 = vmatpush1.bf16.msra.mxu0 %v1133
    %1532 = vmatprep.subr.bf16.mxu0 0
    %1533 = vmatpush1.bf16.msra.mxu0 %v1136
    %1534 = vmatprep.subr.bf16.mxu0 0
    %1535 = vmatpush1.bf16.msra.mxu0 %v1139
    %1536 = vmatprep.subr.bf16.mxu0 0
    %1537 = vmatpush1.bf16.msra.mxu0 %v1142
    %1538 = vmatprep.subr.bf16.mxu0 0
    %1539 = vmatpush1.bf16.msra.mxu0 %v1145
    %1540 = vmatprep.subr.bf16.mxu0 0
    %1541 = vmatpush1.bf16.msra.mxu0 %v1148
    %1542 = vmatprep.subr.bf16.mxu0 0
    %1543 = vmatpush1.bf16.msra.mxu0 %v1151
    %1544 = vmatprep.subr.bf16.mxu0 0
    %1545 = vmatpush1.bf16.msra.mxu0 %v1154
    %1546 = vmatprep.subr.bf16.mxu0 0
    %1547 = vmatpush1.bf16.msra.mxu0 %v1157
    %1548 = vmatprep.subr.bf16.mxu0 0
    %1549 = vmatpush1.bf16.msra.mxu0 %v1160
    %1550 = vmatprep.subr.bf16.mxu0 0
    %1551 = vmatpush1.bf16.msra.mxu0 %v1163
    %1552 = vmatprep.subr.bf16.mxu0 0
    %1553 = vmatpush1.bf16.msra.mxu0 %v1166
    %1554 = vmatprep.mubr.bf16.mxu0 %v379
    %1555 = vmatmul.mubr.bf16.gmra.mrb[0].mxu0 %v378
    %v1556 = vpop.f32.mrb[0].mxu0
    %v1557 = vadd.f32 %v1517, %v1556
    %v1558 = vpop.f32.mrb[0].mxu0
    %v1559 = vpop.f32.mrb[0].mxu0
    %v1560 = vpop.f32.mrb[0].mxu0
    %1561 = vdwg.mxu0
    %1562 = vmatprep.subr.bf16.mxu0 0
    %1563 = vmatpush1.bf16.msra.mxu0 %v1169
    %1564 = vmatprep.subr.bf16.mxu0 0
    %1565 = vmatpush1.bf16.msra.mxu0 %v1172
    %1566 = vmatprep.subr.bf16.mxu0 0
    %1567 = vmatpush1.bf16.msra.mxu0 %v1175
    %1568 = vmatprep.subr.bf16.mxu0 0
    %1569 = vmatpush1.bf16.msra.mxu0 %v1178
    %1570 = vmatprep.subr.bf16.mxu0 0
    %1571 = vmatpush1.bf16.msra.mxu0 %v1181
    %1572 = vmatprep.subr.bf16.mxu0 0
    %1573 = vmatpush1.bf16.msra.mxu0 %v1184
    %1574 = vmatprep.subr.bf16.mxu0 0
    %1575 = vmatpush1.bf16.msra.mxu0 %v1187
    %1576 = vmatprep.subr.bf16.mxu0 0
    %1577 = vmatpush1.bf16.msra.mxu0 %v1190
    %1578 = vmatprep.subr.bf16.mxu0 0
    %1579 = vmatpush1.bf16.msra.mxu0 %v1193
    %1580 = vmatprep.subr.bf16.mxu0 0
    %1581 = vmatpush1.bf16.msra.mxu0 %v1196
    %1582 = vmatprep.subr.bf16.mxu0 0
    %1583 = vmatpush1.bf16.msra.mxu0 %v1199
    %1584 = vmatprep.subr.bf16.mxu0 0
    %1585 = vmatpush1.bf16.msra.mxu0 %v1202
    %1586 = vmatprep.subr.bf16.mxu0 0
    %1587 = vmatpush1.bf16.msra.mxu0 %v1205
    %1588 = vmatprep.subr.bf16.mxu0 0
    %1589 = vmatpush1.bf16.msra.mxu0 %v1208
    %1590 = vmatprep.subr.bf16.mxu0 0
    %1591 = vmatpush1.bf16.msra.mxu0 %v1211
    %1592 = vmatprep.subr.bf16.mxu0 0
    %1593 = vmatpush1.bf16.msra.mxu0 %v1214
    %1594 = vmatprep.mubr.bf16.mxu0 %v381
    %1595 = vmatmul.mubr.bf16.gmra.mrb[0].mxu0 %v380
    %v1596 = vpop.f32.mrb[0].mxu0
    %v1597 = vadd.f32 %v1557, %v1596
    %v1598 = vpop.f32.mrb[0].mxu0
    %v1599 = vpop.f32.mrb[0].mxu0
    %v1600 = vpop.f32.mrb[0].mxu0
    %1601 = vdwg.mxu0
    %v1602 = vmax.f32 %v1476, 0.0
    %v1603 = vmax.f32 %v1478, 0.0
    %v1604 = vmax.f32 %v1597, 0.0
    %v1605 = vpack.c.bf16 %v1602, %v1602
    %v1606 = vpack.c.bf16 %v1603, %v1603
    %v1607 = vpack.c.bf16 %v1604, %v1604
    %v1608 = vld [vmem:[#allocation5] sm:$0xff]
    %v1609 = vld [vmem:[#allocation5 + $0x8] sm:$0xff]
    %v1610 = vld [vmem:[#allocation5 + $0x10] sm:$0xff]
    %v1611 = vld [vmem:[#allocation5 + $0x18] sm:$0xff]
    %v1612 = vld [vmem:[#allocation5 + $0x20] sm:$0xff]
    %v1613 = vld [vmem:[#allocation5 + $0x28] sm:$0xff]
    %v1614 = vld [vmem:[#allocation5 + $0x30] sm:$0xff]
    %v1615 = vld [vmem:[#allocation5 + $0x38] sm:$0xff]
    %v1616 = vld [vmem:[#allocation5 + $0x40] sm:$0xff]
    %v1617 = vld [vmem:[#allocation5 + $0x48] sm:$0xff]
    %v1618 = vld [vmem:[#allocation5 + $0x50] sm:$0xff]
    %v1619 = vld [vmem:[#allocation5 + $0x58] sm:$0xff]
    %v1620 = vld [vmem:[#allocation5 + $0x60] sm:$0xff]
    %v1621 = vld [vmem:[#allocation5 + $0x68] sm:$0xff]
    %v1622 = vld [vmem:[#allocation5 + $0x70] sm:$0xff]
    %v1623 = vld [vmem:[#allocation5 + $0x78] sm:$0xff]
    %v1624 = vld [vmem:[#allocation5 + $0x80] sm:$0xff]
    %v1625 = vld [vmem:[#allocation5 + $0x88] sm:$0xff]
    %v1626 = vld [vmem:[#allocation5 + $0x90] sm:$0xff]
    %v1627 = vld [vmem:[#allocation5 + $0x98] sm:$0xff]
    %v1628 = vld [vmem:[#allocation5 + $0xa0] sm:$0xff]
    %v1629 = vld [vmem:[#allocation5 + $0xa8] sm:$0xff]
    %v1630 = vld [vmem:[#allocation5 + $0xb0] sm:$0xff]
    %v1631 = vld [vmem:[#allocation5 + $0xb8] sm:$0xff]
    %v1632 = vld [vmem:[#allocation5 + $0xc0] sm:$0xff]
    %v1633 = vld [vmem:[#allocation5 + $0xc8] sm:$0xff]
    %v1634 = vld [vmem:[#allocation5 + $0xd0] sm:$0xff]
    %v1635 = vld [vmem:[#allocation5 + $0xd8] sm:$0xff]
    %v1636 = vld [vmem:[#allocation5 + $0xe0] sm:$0xff]
    %v1637 = vld [vmem:[#allocation5 + $0xe8] sm:$0xff]
    %v1638 = vld [vmem:[#allocation5 + $0xf0] sm:$0xff]
    %v1639 = vld [vmem:[#allocation5 + $0xf8] sm:$0xff]
    %v1640 = vld [vmem:[#allocation5 + $0x100] sm:$0xff]
    %v1641 = vld [vmem:[#allocation5 + $0x108] sm:$0xff]
    %v1642 = vld [vmem:[#allocation5 + $0x110] sm:$0xff]
    %v1643 = vld [vmem:[#allocation5 + $0x118] sm:$0xff]
    %v1644 = vld [vmem:[#allocation5 + $0x120] sm:$0xff]
    %v1645 = vld [vmem:[#allocation5 + $0x128] sm:$0xff]
    %v1646 = vld [vmem:[#allocation5 + $0x130] sm:$0xff]
    %v1647 = vld [vmem:[#allocation5 + $0x138] sm:$0xff]
    %v1648 = vld [vmem:[#allocation5 + $0x140] sm:$0xff]
    %v1649 = vld [vmem:[#allocation5 + $0x148] sm:$0xff]
    %v1650 = vld [vmem:[#allocation5 + $0x150] sm:$0xff]
    %v1651 = vld [vmem:[#allocation5 + $0x158] sm:$0xff]
    %v1652 = vld [vmem:[#allocation5 + $0x160] sm:$0xff]
    %v1653 = vld [vmem:[#allocation5 + $0x168] sm:$0xff]
    %v1654 = vld [vmem:[#allocation5 + $0x170] sm:$0xff]
    %v1655 = vld [vmem:[#allocation5 + $0x178] sm:$0xff]
    %v1656 = vld [vmem:[%s6] sm:$0x3]
    %v1658 = vlaneseq
    %v1659 = vshrl.u32 %v1658, 7
    %v1660 = vsub.s32 0, %v1659
    %v1661 = vrot.slane %v1656, %v1660
    %v1662 = vlaneseq
    %v1663 = vshrl.u32 %v1662, 7
    %v1664 = vsub.s32 1, %v1663
    %v1665 = vrot.slane %v1656, %v1664
    %v1716 = vunpack.c.l.b16 %v1608
    %v1717 = vunpack.c.h.b16 %v1608
    %v1718 = vunpack.c.l.b16 %v1609
    %v1719 = vunpack.c.h.b16 %v1609
    %v1720 = vunpack.c.l.b16 %v1610
    %v1721 = vunpack.c.h.b16 %v1610
    %v1722 = vunpack.c.l.b16 %v1611
    %v1723 = vunpack.c.h.b16 %v1611
    %v1724 = vunpack.c.l.b16 %v1612
    %v1725 = vunpack.c.h.b16 %v1612
    %v1726 = vunpack.c.l.b16 %v1613
    %v1727 = vunpack.c.h.b16 %v1613
    %v1728 = vunpack.c.l.b16 %v1614
    %v1729 = vunpack.c.h.b16 %v1614
    %v1730 = vunpack.c.l.b16 %v1615
    %v1731 = vunpack.c.h.b16 %v1615
    %v1732 = vunpack.c.l.b16 %v1616
    %v1733 = vunpack.c.h.b16 %v1616
    %v1734 = vunpack.c.l.b16 %v1617
    %v1735 = vunpack.c.h.b16 %v1617
    %v1736 = vunpack.c.l.b16 %v1618
    %v1737 = vunpack.c.h.b16 %v1618
    %v1738 = vunpack.c.l.b16 %v1619
    %v1739 = vunpack.c.h.b16 %v1619
    %v1740 = vunpack.c.l.b16 %v1620
    %v1741 = vunpack.c.h.b16 %v1620
    %v1742 = vunpack.c.l.b16 %v1621
    %v1743 = vunpack.c.h.b16 %v1621
    %v1744 = vunpack.c.l.b16 %v1622
    %v1745 = vunpack.c.h.b16 %v1622
    %v1746 = vunpack.c.l.b16 %v1623
    %v1747 = vunpack.c.h.b16 %v1623
    %v1748 = vunpack.c.l.b16 %v1624
    %v1749 = vunpack.c.h.b16 %v1624
    %v1750 = vunpack.c.l.b16 %v1625
    %v1751 = vunpack.c.h.b16 %v1625
    %v1752 = vunpack.c.l.b16 %v1626
    %v1753 = vunpack.c.h.b16 %v1626
    %v1754 = vunpack.c.l.b16 %v1627
    %v1755 = vunpack.c.h.b16 %v1627
    %v1756 = vunpack.c.l.b16 %v1628
    %v1757 = vunpack.c.h.b16 %v1628
    %v1758 = vunpack.c.l.b16 %v1629
    %v1759 = vunpack.c.h.b16 %v1629
    %v1760 = vunpack.c.l.b16 %v1630
    %v1761 = vunpack.c.h.b16 %v1630
    %v1762 = vunpack.c.l.b16 %v1631
    %v1763 = vunpack.c.h.b16 %v1631
    %v1764 = vunpack.c.l.b16 %v1632
    %v1765 = vunpack.c.h.b16 %v1632
    %v1766 = vunpack.c.l.b16 %v1633
    %v1767 = vunpack.c.h.b16 %v1633
    %v1768 = vunpack.c.l.b16 %v1634
    %v1769 = vunpack.c.h.b16 %v1634
    %v1770 = vunpack.c.l.b16 %v1635
    %v1771 = vunpack.c.h.b16 %v1635
    %v1772 = vunpack.c.l.b16 %v1636
    %v1773 = vunpack.c.h.b16 %v1636
    %v1774 = vunpack.c.l.b16 %v1637
    %v1775 = vunpack.c.h.b16 %v1637
    %v1776 = vunpack.c.l.b16 %v1638
    %v1777 = vunpack.c.h.b16 %v1638
    %v1778 = vunpack.c.l.b16 %v1639
    %v1779 = vunpack.c.h.b16 %v1639
    %v1780 = vunpack.c.l.b16 %v1640
    %v1781 = vunpack.c.h.b16 %v1640
    %v1782 = vunpack.c.l.b16 %v1641
    %v1783 = vunpack.c.h.b16 %v1641
    %v1784 = vunpack.c.l.b16 %v1642
    %v1785 = vunpack.c.h.b16 %v1642
    %v1786 = vunpack.c.l.b16 %v1643
    %v1787 = vunpack.c.h.b16 %v1643
    %v1788 = vunpack.c.l.b16 %v1644
    %v1789 = vunpack.c.h.b16 %v1644
    %v1790 = vunpack.c.l.b16 %v1645
    %v1791 = vunpack.c.h.b16 %v1645
    %v1792 = vunpack.c.l.b16 %v1646
    %v1793 = vunpack.c.h.b16 %v1646
    %v1794 = vunpack.c.l.b16 %v1647
    %v1795 = vunpack.c.h.b16 %v1647
    %v1796 = vunpack.c.l.b16 %v1648
    %v1797 = vunpack.c.h.b16 %v1648
    %v1798 = vunpack.c.l.b16 %v1649
    %v1799 = vunpack.c.h.b16 %v1649
    %v1800 = vunpack.c.l.b16 %v1650
    %v1801 = vunpack.c.h.b16 %v1650
    %v1802 = vunpack.c.l.b16 %v1651
    %v1803 = vunpack.c.h.b16 %v1651
    %v1804 = vunpack.c.l.b16 %v1652
    %v1805 = vunpack.c.h.b16 %v1652
    %v1806 = vunpack.c.l.b16 %v1653
    %v1807 = vunpack.c.h.b16 %v1653
    %v1808 = vunpack.c.l.b16 %v1654
    %v1809 = vunpack.c.h.b16 %v1654
    %v1810 = vunpack.c.l.b16 %v1655
    %v1811 = vunpack.c.h.b16 %v1655
    %v1812 = vpack.c.b16 %v1718, %v1716
    %v1813 = vpack.c.b16 %v1719, %v1717
    %v1814 = vpack.c.b16 %v1722, %v1720
    %v1815 = vpack.c.b16 %v1723, %v1721
    %v1816 = vpack.c.b16 %v1726, %v1724
    %v1817 = vpack.c.b16 %v1727, %v1725
    %v1818 = vpack.c.b16 %v1730, %v1728
    %v1819 = vpack.c.b16 %v1731, %v1729
    %v1820 = vpack.c.b16 %v1734, %v1732
    %v1821 = vpack.c.b16 %v1735, %v1733
    %v1822 = vpack.c.b16 %v1738, %v1736
    %v1823 = vpack.c.b16 %v1739, %v1737
    %v1824 = vpack.c.b16 %v1742, %v1740
    %v1825 = vpack.c.b16 %v1743, %v1741
    %v1826 = vpack.c.b16 %v1746, %v1744
    %v1827 = vpack.c.b16 %v1747, %v1745
    %v1828 = vpack.c.b16 %v1750, %v1748
    %v1829 = vpack.c.b16 %v1751, %v1749
    %v1830 = vpack.c.b16 %v1754, %v1752
    %v1831 = vpack.c.b16 %v1755, %v1753
    %v1832 = vpack.c.b16 %v1758, %v1756
    %v1833 = vpack.c.b16 %v1759, %v1757
    %v1834 = vpack.c.b16 %v1762, %v1760
    %v1835 = vpack.c.b16 %v1763, %v1761
    %v1836 = vpack.c.b16 %v1766, %v1764
    %v1837 = vpack.c.b16 %v1767, %v1765
    %v1838 = vpack.c.b16 %v1770, %v1768
    %v1839 = vpack.c.b16 %v1771, %v1769
    %v1840 = vpack.c.b16 %v1774, %v1772
    %v1841 = vpack.c.b16 %v1775, %v1773
    %v1842 = vpack.c.b16 %v1778, %v1776
    %v1843 = vpack.c.b16 %v1779, %v1777
    %v1844 = vpack.c.b16 %v1782, %v1780
    %v1845 = vpack.c.b16 %v1783, %v1781
    %v1846 = vpack.c.b16 %v1786, %v1784
    %v1847 = vpack.c.b16 %v1787, %v1785
    %v1848 = vpack.c.b16 %v1790, %v1788
    %v1849 = vpack.c.b16 %v1791, %v1789
    %v1850 = vpack.c.b16 %v1794, %v1792
    %v1851 = vpack.c.b16 %v1795, %v1793
    %v1852 = vpack.c.b16 %v1798, %v1796
    %v1853 = vpack.c.b16 %v1799, %v1797
    %v1854 = vpack.c.b16 %v1802, %v1800
    %v1855 = vpack.c.b16 %v1803, %v1801
    %v1856 = vpack.c.b16 %v1806, %v1804
    %v1857 = vpack.c.b16 %v1807, %v1805
    %v1858 = vpack.c.b16 %v1810, %v1808
    %v1859 = vpack.c.b16 %v1811, %v1809
    %1908 = vmatprep.subr.bf16.mxu0 %v1813
    %1909 = vmatpush1.bf16.msra.mxu0 %v1812
    %1910 = vmatprep.subr.bf16.mxu0 %v1815
    %1911 = vmatpush1.bf16.msra.mxu0 %v1814
    %1912 = vmatprep.subr.bf16.mxu0 %v1817
    %1913 = vmatpush1.bf16.msra.mxu0 %v1816
    %1914 = vmatprep.subr.bf16.mxu0 %v1819
    %1915 = vmatpush1.bf16.msra.mxu0 %v1818
    %1916 = vmatprep.subr.bf16.mxu0 %v1821
    %1917 = vmatpush1.bf16.msra.mxu0 %v1820
    %1918 = vmatprep.subr.bf16.mxu0 %v1823
    %1919 = vmatpush1.bf16.msra.mxu0 %v1822
    %1920 = vmatprep.subr.bf16.mxu0 %v1825
    %1921 = vmatpush1.bf16.msra.mxu0 %v1824
    %1922 = vmatprep.subr.bf16.mxu0 %v1827
    %1923 = vmatpush1.bf16.msra.mxu0 %v1826
    %1924 = vmatprep.subr.bf16.mxu0 %v1829
    %1925 = vmatpush1.bf16.msra.mxu0 %v1828
    %1926 = vmatprep.subr.bf16.mxu0 %v1831
    %1927 = vmatpush1.bf16.msra.mxu0 %v1830
    %1928 = vmatprep.subr.bf16.mxu0 %v1833
    %1929 = vmatpush1.bf16.msra.mxu0 %v1832
    %1930 = vmatprep.subr.bf16.mxu0 %v1835
    %1931 = vmatpush1.bf16.msra.mxu0 %v1834
    %1932 = vmatprep.subr.bf16.mxu0 %v1837
    %1933 = vmatpush1.bf16.msra.mxu0 %v1836
    %1934 = vmatprep.subr.bf16.mxu0 %v1839
    %1935 = vmatpush1.bf16.msra.mxu0 %v1838
    %1936 = vmatprep.subr.bf16.mxu0 %v1841
    %1937 = vmatpush1.bf16.msra.mxu0 %v1840
    %1938 = vmatprep.subr.bf16.mxu0 %v1843
    %1939 = vmatpush1.bf16.msra.mxu0 %v1842
    %1940 = vmatprep.mubr.bf16.mxu0 %v1606
    %1941 = vmatmul.mubr.bf16.gmra.mrb[0].mxu0 %v1605
    %v1942 = vpop.f32.mrb[0].mxu0
    %v1943 = vadd.f32 %v1661, %v1942
    %v1944 = vpop.f32.mrb[0].mxu0
    %v1945 = vadd.f32 %v1665, %v1944
    %v1946 = vpop.f32.mrb[0].mxu0
    %v1947 = vpop.f32.mrb[0].mxu0
    %1948 = vdwg.mxu0
    %1949 = vmatprep.subr.bf16.mxu0 %v1845
    %1950 = vmatpush1.bf16.msra.mxu0 %v1844
    %1951 = vmatprep.subr.bf16.mxu0 %v1847
    %1952 = vmatpush1.bf16.msra.mxu0 %v1846
    %1953 = vmatprep.subr.bf16.mxu0 %v1849
    %1954 = vmatpush1.bf16.msra.mxu0 %v1848
    %1955 = vmatprep.subr.bf16.mxu0 %v1851
    %1956 = vmatpush1.bf16.msra.mxu0 %v1850
    %1957 = vmatprep.subr.bf16.mxu0 %v1853
    %1958 = vmatpush1.bf16.msra.mxu0 %v1852
    %1959 = vmatprep.subr.bf16.mxu0 %v1855
    %1960 = vmatpush1.bf16.msra.mxu0 %v1854
    %1961 = vmatprep.subr.bf16.mxu0 %v1857
    %1962 = vmatpush1.bf16.msra.mxu0 %v1856
    %1963 = vmatprep.subr.bf16.mxu0 %v1859
    %1964 = vmatpush1.bf16.msra.mxu0 %v1858
    %1965 = vmatprep.subr.bf16.mxu0 0
    %1966 = vmatpush1.bf16.msra.mxu0 0
    %1967 = vmatprep.subr.bf16.mxu0 0
    %1968 = vmatpush1.bf16.msra.mxu0 0
    %1969 = vmatprep.subr.bf16.mxu0 0
    %1970 = vmatpush1.bf16.msra.mxu0 0
    %1971 = vmatprep.subr.bf16.mxu0 0
    %1972 = vmatpush1.bf16.msra.mxu0 0
    %1973 = vmatprep.subr.bf16.mxu0 0
    %1974 = vmatpush1.bf16.msra.mxu0 0
    %1975 = vmatprep.subr.bf16.mxu0 0
    %1976 = vmatpush1.bf16.msra.mxu0 0
    %1977 = vmatprep.subr.bf16.mxu0 0
    %1978 = vmatpush1.bf16.msra.mxu0 0
    %1979 = vmatprep.subr.bf16.mxu0 0
    %1980 = vmatpush1.bf16.msra.mxu0 0
    %1981 = vmatprep.mubr.bf16.mxu0 0
    %1982 = vmatmul.mubr.bf16.gmra.mrb[0].mxu0 %v1607
    %v1983 = vpop.f32.mrb[0].mxu0
    %v1984 = vadd.f32 %v1943, %v1983
    %v1985 = vpop.f32.mrb[0].mxu0
    %v1986 = vadd.f32 %v1945, %v1985
    %v1987 = vpop.f32.mrb[0].mxu0
    %v1988 = vpop.f32.mrb[0].mxu0
    %1989 = vdwg.mxu0
    %v1990 = vmax.f32 %v1984, 0.0
    %v1991 = vmax.f32 %v1986, 0.0
    %v1992 = vpack.c.bf16 %v1990, %v1990
    %v1993 = vpack.c.bf16 %v1991, %v1991
    %v1994 = vld [vmem:[#allocation7] sm:$0xf]
    %v1995 = vld [vmem:[#allocation7 + $0x4] sm:$0xf]
    %v1996 = vld [vmem:[#allocation7 + $0x8] sm:$0xf]
    %v1997 = vld [vmem:[#allocation7 + $0xc] sm:$0xf]
    %v1998 = vld [vmem:[#allocation7 + $0x10] sm:$0xf]
    %v1999 = vld [vmem:[#allocation7 + $0x14] sm:$0xf]
    %v2000 = vld [vmem:[#allocation7 + $0x18] sm:$0xf]
    %v2001 = vld [vmem:[#allocation7 + $0x1c] sm:$0xf]
    %v2002 = vld [vmem:[#allocation7 + $0x20] sm:$0xf]
    %v2003 = vld [vmem:[#allocation7 + $0x24] sm:$0xf]
    %v2004 = vld [vmem:[#allocation7 + $0x28] sm:$0xf]
    %v2005 = vld [vmem:[#allocation7 + $0x2c] sm:$0xf]
    %v2006 = vld [vmem:[#allocation7 + $0x30] sm:$0xf]
    %v2007 = vld [vmem:[#allocation7 + $0x34] sm:$0xf]
    %v2008 = vld [vmem:[#allocation7 + $0x38] sm:$0xf]
    %v2009 = vld [vmem:[#allocation7 + $0x3c] sm:$0xf]
    %v2010 = vld [vmem:[#allocation7 + $0x40] sm:$0xf]
    %v2011 = vld [vmem:[#allocation7 + $0x44] sm:$0xf]
    %v2012 = vld [vmem:[#allocation7 + $0x48] sm:$0xf]
    %v2013 = vld [vmem:[#allocation7 + $0x4c] sm:$0xf]
    %v2014 = vld [vmem:[#allocation7 + $0x50] sm:$0xf]
    %v2015 = vld [vmem:[#allocation7 + $0x54] sm:$0xf]
    %v2016 = vld [vmem:[#allocation7 + $0x58] sm:$0xf]
    %v2017 = vld [vmem:[#allocation7 + $0x5c] sm:$0xf]
    %v2018 = vld [vmem:[#allocation7 + $0x60] sm:$0xf]
    %v2019 = vld [vmem:[#allocation7 + $0x64] sm:$0xf]
    %v2020 = vld [vmem:[#allocation7 + $0x68] sm:$0xf]
    %v2021 = vld [vmem:[#allocation7 + $0x6c] sm:$0xf]
    %v2022 = vld [vmem:[#allocation7 + $0x70] sm:$0xf]
    %v2023 = vld [vmem:[#allocation7 + $0x74] sm:$0xf]
    %v2024 = vld [vmem:[#allocation7 + $0x78] sm:$0xf]
    %v2025 = vld [vmem:[#allocation7 + $0x7c] sm:$0xf]
    %v2026 = vld [vmem:[%s8] sm:$0x1]
    %v2028 = vlaneseq
    %v2029 = vshrl.u32 %v2028, 7
    %v2030 = vsub.s32 0, %v2029
    %v2031 = vrot.slane %v2026, %v2030
    %v2065 = vunpack.c.l.b16 %v1994
    %v2066 = vunpack.c.l.b16 %v1995
    %v2067 = vunpack.c.l.b16 %v1996
    %v2068 = vunpack.c.l.b16 %v1997
    %v2069 = vunpack.c.l.b16 %v1998
    %v2070 = vunpack.c.l.b16 %v1999
    %v2071 = vunpack.c.l.b16 %v2000
    %v2072 = vunpack.c.l.b16 %v2001
    %v2073 = vunpack.c.l.b16 %v2002
    %v2074 = vunpack.c.l.b16 %v2003
    %v2075 = vunpack.c.l.b16 %v2004
    %v2076 = vunpack.c.l.b16 %v2005
    %v2077 = vunpack.c.l.b16 %v2006
    %v2078 = vunpack.c.l.b16 %v2007
    %v2079 = vunpack.c.l.b16 %v2008
    %v2080 = vunpack.c.l.b16 %v2009
    %v2081 = vunpack.c.l.b16 %v2010
    %v2082 = vunpack.c.l.b16 %v2011
    %v2083 = vunpack.c.l.b16 %v2012
    %v2084 = vunpack.c.l.b16 %v2013
    %v2085 = vunpack.c.l.b16 %v2014
    %v2086 = vunpack.c.l.b16 %v2015
    %v2087 = vunpack.c.l.b16 %v2016
    %v2088 = vunpack.c.l.b16 %v2017
    %v2089 = vunpack.c.l.b16 %v2018
    %v2090 = vunpack.c.l.b16 %v2019
    %v2091 = vunpack.c.l.b16 %v2020
    %v2092 = vunpack.c.l.b16 %v2021
    %v2093 = vunpack.c.l.b16 %v2022
    %v2094 = vunpack.c.l.b16 %v2023
    %v2095 = vunpack.c.l.b16 %v2024
    %v2096 = vunpack.c.l.b16 %v2025
    %v2097 = vpack.c.b16 %v2066, %v2065
    %v2098 = vpack.c.b16 %v2068, %v2067
    %v2099 = vpack.c.b16 %v2070, %v2069
    %v2100 = vpack.c.b16 %v2072, %v2071
    %v2101 = vpack.c.b16 %v2074, %v2073
    %v2102 = vpack.c.b16 %v2076, %v2075
    %v2103 = vpack.c.b16 %v2078, %v2077
    %v2104 = vpack.c.b16 %v2080, %v2079
    %v2105 = vpack.c.b16 %v2082, %v2081
    %v2106 = vpack.c.b16 %v2084, %v2083
    %v2107 = vpack.c.b16 %v2086, %v2085
    %v2108 = vpack.c.b16 %v2088, %v2087
    %v2109 = vpack.c.b16 %v2090, %v2089
    %v2110 = vpack.c.b16 %v2092, %v2091
    %v2111 = vpack.c.b16 %v2094, %v2093
    %v2112 = vpack.c.b16 %v2096, %v2095
    %2129 = vmatprep.subr.bf16.mxu0 0
    %2130 = vmatpush1.bf16.msra.mxu0 %v2097
    %2131 = vmatprep.subr.bf16.mxu0 0
    %2132 = vmatpush1.bf16.msra.mxu0 %v2098
    %2133 = vmatprep.subr.bf16.mxu0 0
    %2134 = vmatpush1.bf16.msra.mxu0 %v2099
    %2135 = vmatprep.subr.bf16.mxu0 0
    %2136 = vmatpush1.bf16.msra.mxu0 %v2100
    %2137 = vmatprep.subr.bf16.mxu0 0
    %2138 = vmatpush1.bf16.msra.mxu0 %v2101
    %2139 = vmatprep.subr.bf16.mxu0 0
    %2140 = vmatpush1.bf16.msra.mxu0 %v2102
    %2141 = vmatprep.subr.bf16.mxu0 0
    %2142 = vmatpush1.bf16.msra.mxu0 %v2103
    %2143 = vmatprep.subr.bf16.mxu0 0
    %2144 = vmatpush1.bf16.msra.mxu0 %v2104
    %2145 = vmatprep.subr.bf16.mxu0 0
    %2146 = vmatpush1.bf16.msra.mxu0 %v2105
    %2147 = vmatprep.subr.bf16.mxu0 0
    %2148 = vmatpush1.bf16.msra.mxu0 %v2106
    %2149 = vmatprep.subr.bf16.mxu0 0
    %2150 = vmatpush1.bf16.msra.mxu0 %v2107
    %2151 = vmatprep.subr.bf16.mxu0 0
    %2152 = vmatpush1.bf16.msra.mxu0 %v2108
    %2153 = vmatprep.subr.bf16.mxu0 0
    %2154 = vmatpush1.bf16.msra.mxu0 %v2109
    %2155 = vmatprep.subr.bf16.mxu0 0
    %2156 = vmatpush1.bf16.msra.mxu0 %v2110
    %2157 = vmatprep.subr.bf16.mxu0 0
    %2158 = vmatpush1.bf16.msra.mxu0 %v2111
    %2159 = vmatprep.subr.bf16.mxu0 0
    %2160 = vmatpush1.bf16.msra.mxu0 %v2112
    %2161 = vmatprep.mubr.bf16.mxu0 %v1993
    %2162 = vmatmul.mubr.bf16.gmra.mrb[0].mxu0 %v1992
    %v2163 = vpop.f32.mrb[0].mxu0
    %v2164 = vadd.f32 %v2031, %v2163
    %v2165 = vpop.f32.mrb[0].mxu0
    %v2166 = vpop.f32.mrb[0].mxu0
    %v2167 = vpop.f32.mrb[0].mxu0
    %2168 = vdwg.mxu0
    %v2169 = vmax.f32 %v2164, 0.0
    %v2170 = vpack.c.bf16 %v2169, %v2169
    %v2171 = vld [vmem:[%s9] sm:$0xf]
    %v2172 = vld [vmem:[%s9 + $0x4] sm:$0xf]
    %v2173 = vld [vmem:[%s9 + $0x8] sm:$0xf]
    %v2174 = vld [vmem:[%s9 + $0xc] sm:$0xf]
    %v2175 = vld [vmem:[%s9 + $0x10] sm:$0xf]
    %v2176 = vld [vmem:[%s9 + $0x14] sm:$0xf]
    %v2177 = vld [vmem:[%s9 + $0x18] sm:$0xf]
    %v2178 = vld [vmem:[%s9 + $0x1c] sm:$0xf]
    %v2179 = vld [vmem:[%s9 + $0x20] sm:$0xf]
    %v2180 = vld [vmem:[%s9 + $0x24] sm:$0xf]
    %v2181 = vld [vmem:[%s9 + $0x28] sm:$0xf]
    %v2182 = vld [vmem:[%s9 + $0x2c] sm:$0xf]
    %v2183 = vld [vmem:[%s9 + $0x30] sm:$0xf]
    %v2184 = vld [vmem:[%s9 + $0x34] sm:$0xf]
    %v2185 = vld [vmem:[%s9 + $0x38] sm:$0xf]
    %v2186 = vld [vmem:[%s9 + $0x3c] sm:$0xf]
    %v2187 = vld [vmem:[%s10] sm:$0x1]
    %v2189 = vlaneseq
    %v2190 = vshrl.u32 %v2189, 7
    %v2191 = vsub.s32 0, %v2190
    %v2192 = vrot.slane %v2187, %v2191
    %v2210 = vunpack.c.l.b16 %v2171
    %v2211 = vunpack.c.l.b16 %v2172
    %v2212 = vunpack.c.l.b16 %v2173
    %v2213 = vunpack.c.l.b16 %v2174
    %v2214 = vunpack.c.l.b16 %v2175
    %v2215 = vunpack.c.l.b16 %v2176
    %v2216 = vunpack.c.l.b16 %v2177
    %v2217 = vunpack.c.l.b16 %v2178
    %v2218 = vunpack.c.l.b16 %v2179
    %v2219 = vunpack.c.l.b16 %v2180
    %v2220 = vunpack.c.l.b16 %v2181
    %v2221 = vunpack.c.l.b16 %v2182
    %v2222 = vunpack.c.l.b16 %v2183
    %v2223 = vunpack.c.l.b16 %v2184
    %v2224 = vunpack.c.l.b16 %v2185
    %v2225 = vunpack.c.l.b16 %v2186
    %v2226 = vpack.c.b16 %v2211, %v2210
    %v2227 = vpack.c.b16 %v2213, %v2212
    %v2228 = vpack.c.b16 %v2215, %v2214
    %v2229 = vpack.c.b16 %v2217, %v2216
    %v2230 = vpack.c.b16 %v2219, %v2218
    %v2231 = vpack.c.b16 %v2221, %v2220
    %v2232 = vpack.c.b16 %v2223, %v2222
    %v2233 = vpack.c.b16 %v2225, %v2224
    %2242 = vmatprep.subr.bf16.mxu0 0
    %2243 = vmatpush1.bf16.msra.mxu0 %v2226
    %2244 = vmatprep.subr.bf16.mxu0 0
    %2245 = vmatpush1.bf16.msra.mxu0 %v2227
    %2246 = vmatprep.subr.bf16.mxu0 0
    %2247 = vmatpush1.bf16.msra.mxu0 %v2228
    %2248 = vmatprep.subr.bf16.mxu0 0
    %2249 = vmatpush1.bf16.msra.mxu0 %v2229
    %2250 = vmatprep.subr.bf16.mxu0 0
    %2251 = vmatpush1.bf16.msra.mxu0 %v2230
    %2252 = vmatprep.subr.bf16.mxu0 0
    %2253 = vmatpush1.bf16.msra.mxu0 %v2231
    %2254 = vmatprep.subr.bf16.mxu0 0
    %2255 = vmatpush1.bf16.msra.mxu0 %v2232
    %2256 = vmatprep.subr.bf16.mxu0 0
    %2257 = vmatpush1.bf16.msra.mxu0 %v2233
    %2258 = vmatprep.subr.bf16.mxu0 0
    %2259 = vmatpush1.bf16.msra.mxu0 0
    %2260 = vmatprep.subr.bf16.mxu0 0
    %2261 = vmatpush1.bf16.msra.mxu0 0
    %2262 = vmatprep.subr.bf16.mxu0 0
    %2263 = vmatpush1.bf16.msra.mxu0 0
    %2264 = vmatprep.subr.bf16.mxu0 0
    %2265 = vmatpush1.bf16.msra.mxu0 0
    %2266 = vmatprep.subr.bf16.mxu0 0
    %2267 = vmatpush1.bf16.msra.mxu0 0
    %2268 = vmatprep.subr.bf16.mxu0 0
    %2269 = vmatpush1.bf16.msra.mxu0 0
    %2270 = vmatprep.subr.bf16.mxu0 0
    %2271 = vmatpush1.bf16.msra.mxu0 0
    %2272 = vmatprep.subr.bf16.mxu0 0
    %2273 = vmatpush1.bf16.msra.mxu0 0
    %2274 = vmatprep.mubr.bf16.mxu0 0
    %2275 = vmatmul.mubr.bf16.gmra.mrb[0].mxu0 %v2170
    %v2276 = vpop.f32.mrb[0].mxu0
    %v2277 = vadd.f32 %v2192, %v2276
    %v2278 = vpop.f32.mrb[0].mxu0
    %v2279 = vpop.f32.mrb[0].mxu0
    %v2280 = vpop.f32.mrb[0].mxu0
    %2281 = vdwg.mxu0
    %v2282 = vmax.f32 %v2277, 0.0
    %v2283 = vld [vmem:[%s11] sm:$0x1]
    %v2285 = vlaneseq
    %v2286 = vshrl.u32 %v2285, 7
    %v2287 = vsub.s32 0, %v2286
    %v2288 = vrot.slane %v2283, %v2287
    %v2290 = vmul.f32 %v2282, %v2288
    %vm2291 = vcmask 523264
    %v2292 = vsel %vm2291, %v2290, 0.0
    %2293 = vadd.xlane.f32.xlu0 %v2292
    %v2294 = vpop.xlane.xlu0 %2293
    %v2295 = vld [vmem:[#allocation2] sm:$0x1]
    %v2297 = vlaneseq
    %v2298 = vshrl.u32 %v2297, 7
    %v2299 = vsub.s32 0, %v2298
    %v2300 = vrot.slane %v2295, %v2299
    %v2302 = vadd.f32 %v2294, %v2300
    %vm2303 = vcmask 7168
    %2304 = vst.msk [vmem:[%s13] sm:$0xff] %vm2303, %v2302
    // Predicated region
    $region66: #{critic_forward.1} parent=1 // pred_check
      _
    $region67: #{critic_forward.1} parent=1 // pred_check_branch
      %2306 = sbr.rel (0) target = $region69
    $region68: #{critic_forward.1} parent=1 // pred_region
      _
    $region69: #{critic_forward.1} parent=1 // pred_fallthru
      _
    // Predicated region
    $region70: #{critic_forward.1} parent=1 // pred_check
      _
    $region71: #{critic_forward.1} parent=1 // pred_check_branch
      %2308 = sbr.rel (0) target = $region73
    $region72: #{critic_forward.1} parent=1 // pred_region
      _
    $region73: #{critic_forward.1} parent=1 // pred_fallthru
      _
    %2309 = vsyncpa [#allocation4], 1
    %2310 = vsyncpa [#allocation6], 1

</llo_original>
